<compile_context>
chip_gen: v5e
topology: v5e:2x2
jax: 0.10.0
libtpu: 0.0.40
codegen_flags: <defaults>
</compile_context>

<pallas_src>
import jax
import jax.numpy as jnp
from jax import lax
from jax.experimental import pallas as pl
from jax.experimental.pallas import tpu as pltpu


# --------------------------- Pallas kernels ---------------------------------
def _conv3x3_stats_kernel(xp_ref, w1_ref, acc_ref, sum_ref, ssq_ref):
    """Pass 1: 3x3 conv (stride 1, pad 1, no bias) + per-image channel stats.

    Grid axis = batch image index ("parallel").

    xp_ref : (1, H+2, W+2, Cin) bf16  zero-padded NHWC input for one image
    w1_ref : (9*Cin, Cmid)      bf16  3x3 weights flattened (ky, kx, cin)-major
    acc_ref: (H*W, Cmid)        f32   conv output rows for this image
    sum_ref: (1, 1, Cmid)       f32   per-image channel sum   (for BN)
    ssq_ref: (1, 1, Cmid)       f32   per-image channel sumsq (for BN)
    """
    _, Hp, Wp, Cin = xp_ref.shape
    H, W = Hp - 2, Wp - 2
    HW = H * W

    x = xp_ref[...]                                    # whole padded tile, bf16

    # Build the 3 W-shifted slabs once (these are the sublane-unaligned slices)
    # and reuse them across the 3 cheap H offsets, then assemble the
    # (HW, 9*Cin) im2col slab and do ONE MXU matmul with K = 9*Cin.
    xw = [x[:, :, dx:dx + W, :] for dx in range(3)]    # each (1, Hp, W, Cin)
    pieces = [xw[dx][:, dy:dy + H, :, :].reshape(HW, Cin)
              for dy in range(3) for dx in range(3)]   # tap order = dy*3 + dx
    patches = jnp.concatenate(pieces, axis=-1)         # (HW, 9*Cin) bf16

    acc = jnp.dot(patches, w1_ref[...],
                  preferred_element_type=jnp.float32)  # (HW, Cmid) f32
    acc_ref[...] = acc

    # Per-image partial stats; the tiny cross-image reduction happens in the
    # wrapper, so this grid axis stays fully "parallel" (no resident acc).
    sum_ref[...] = jnp.sum(acc, axis=0).reshape(1, 1, -1)
    ssq_ref[...] = jnp.sum(acc * acc, axis=0).reshape(1, 1, -1)


def _bn_mish_conv1x1_kernel(acc_ref, s_ref, t_ref, w2_ref, b2_ref, out_ref):
    """Pass 2: folded BN (y = acc*s + t) + one-exp Mish + 1x1 conv (+bias).

    Grid axis = row tiles over M = N*H*W ("parallel").

    acc_ref: (TM, Cmid)      f32   pass-1 conv output tile
    s_ref  : (1, Cmid)       f32   gamma * rsqrt(var + eps)
    t_ref  : (1, Cmid)       f32   beta - mean * s
    w2_ref : (Cmid, Cout_p)  bf16  1x1 weights, Cout padded to mult. of 128
    b2_ref : (1, Cout_p)     f32   1x1 bias, zero-padded
    out_ref: (TM, Cout_p)    f32   lane-dense output tile
    """
    y = acc_ref[...] * s_ref[...] + t_ref[...]         # f32, broadcasts hoisted

    # Mish = y * tanh(softplus(y)) with a single transcendental:
    #   e = exp(-|y|)
    #   y >= 0 : tanh(sp) = (1 + 2e) / (1 + 2e + 2e^2)
    #   y <  0 : tanh(sp) = (e^2 + 2e) / (e^2 + 2e + 2)
    e = jnp.exp(-jnp.abs(y))
    q = e * (e + 2.0)
    num = jnp.where(y >= 0.0, 1.0 + 2.0 * e, q)
    den = num + jnp.where(y >= 0.0, 2.0 * e * e, 2.0)
    m = y * (num * pl.reciprocal(den, approx=True))

    z = jnp.dot(m.astype(jnp.bfloat16), w2_ref[...],
                preferred_element_type=jnp.float32) + b2_ref[...]
    out_ref[...] = z


# ------------------------------ wrapper --------------------------------------
def _pick_row_tile(m, cap=256):
    """Largest multiple of 8 that divides m and is <= cap (falls back to m)."""
    start = min(m, cap)
    start -= start % 8
    for cand in range(start, 7, -8):
        if m % cand == 0:
            return cand
    return m


@jax.jit
def yolo_head_scale(x_nchw, w1_hwio, gamma, beta, w2_io, b2):
    """One head branch: conv3x3(no bias) -> BN(training stats) -> Mish ->
    conv1x1(+bias). Input/output are NCHW to match the PyTorch module."""
    N, Cin, H, W = x_nchw.shape
    Cmid = w1_hwio.shape[3]
    Cout = w2_io.shape[1]
    Cp = ((Cout + 127) // 128) * 128        # pad 255 -> 256: lane-dense stores
    HW = H * W
    M = N * HW

    # NCHW -> NHWC (channels last = lane dim); pad=1 halo for the 3x3 conv.
    # (Small extra HBM round trip on the branch input; at production scale the
    # halo could be folded into the kernel with edge masking.)
    x = jnp.transpose(x_nchw, (0, 2, 3, 1)).astype(jnp.float32)
    xp = jnp.pad(x, ((0, 0), (1, 1), (1, 1), (0, 0))).astype(jnp.bfloat16)
    w1 = w1_hwio.astype(jnp.bfloat16).reshape(9 * Cin, Cmid)

    # ---- pass 1: conv3x3 + per-image channel stats (grid over batch) --------
    acc, psum, pssq = pl.pallas_call(
        _conv3x3_stats_kernel,
        grid=(N,),
        in_specs=[
            pl.BlockSpec((1, H + 2, W + 2, Cin), lambda i: (i, 0, 0, 0)),
            pl.BlockSpec((9 * Cin, Cmid), lambda i: (0, 0)),
        ],
        out_specs=[
            pl.BlockSpec((HW, Cmid), lambda i: (i, 0)),
            pl.BlockSpec((1, 1, Cmid), lambda i: (i, 0, 0)),
            pl.BlockSpec((1, 1, Cmid), lambda i: (i, 0, 0)),
        ],
        out_shape=(
            jax.ShapeDtypeStruct((M, Cmid), jnp.float32),
            jax.ShapeDtypeStruct((N, 1, Cmid), jnp.float32),
            jax.ShapeDtypeStruct((N, 1, Cmid), jnp.float32),
        ),
        compiler_params=pltpu.CompilerParams(
            dimension_semantics=("parallel",)),
    )(xp, w1)

    # ---- BN (training-mode, biased batch stats) folded into scale/shift -----
    # Computed once on tiny (Cmid,) vectors; pass 2 only does acc*s + t.
    cnt = jnp.float32(M)
    mean = jnp.sum(psum, axis=0).reshape(1, Cmid) / cnt
    var = jnp.maximum(
        jnp.sum(pssq, axis=0).reshape(1, Cmid) / cnt - mean * mean, 0.0)
    s = gamma.astype(jnp.float32).reshape(1, Cmid) * lax.rsqrt(var + 1e-5)
    t = beta.astype(jnp.float32).reshape(1, Cmid) - mean * s

    # ---- pass 2: BN + Mish + 1x1 conv, tiled over rows ("parallel") ---------
    w2p = jnp.pad(w2_io.astype(jnp.float32),
                  ((0, 0), (0, Cp - Cout))).astype(jnp.bfloat16)
    b2p = jnp.pad(b2.astype(jnp.float32), (0, Cp - Cout)).reshape(1, Cp)

    TM = _pick_row_tile(M)
    out2 = pl.pallas_call(
        _bn_mish_conv1x1_kernel,
        grid=(M // TM,),
        in_specs=[
            pl.BlockSpec((TM, Cmid), lambda i: (i, 0)),
            pl.BlockSpec((1, Cmid), lambda i: (0, 0)),
            pl.BlockSpec((1, Cmid), lambda i: (0, 0)),
            pl.BlockSpec((Cmid, Cp), lambda i: (0, 0)),
            pl.BlockSpec((1, Cp), lambda i: (0, 0)),
        ],
        out_specs=pl.BlockSpec((TM, Cp), lambda i: (i, 0)),
        out_shape=jax.ShapeDtypeStruct((M, Cp), jnp.float32),
        compiler_params=pltpu.CompilerParams(
            dimension_semantics=("parallel",)),
    )(acc, s, t, w2p, b2p)

    out = out2.reshape(N, H, W, Cp)[..., :Cout]        # drop Cout padding
    return jnp.transpose(out, (0, 3, 1, 2))            # NHWC -> NCHW


def yolo4_head_forward(features, params):
    """Mirrors Yolo4Head.forward: returns [pre76, pre38, pre19] in NCHW."""
    outputs = []
    for x, p in zip(features, params):
        outputs.append(yolo_head_scale(x, p["w1"], p["gamma"], p["beta"],
                                       p["w2"], p["b2"]))
    return outputs


# ---------------------------- pure-JAX reference -----------------------------
def _reference_scale(x_nchw, w1_hwio, gamma, beta, w2_io, b2):
    x = jnp.transpose(x_nchw, (0, 2, 3, 1)).astype(jnp.float32)
    y = lax.conv_general_dilated(
        x, w1_hwio.astype(jnp.float32), window_strides=(1, 1), padding="SAME",
        dimension_numbers=("NHWC", "HWIO", "NHWC"),
        precision=lax.Precision.HIGHEST)
    mean = jnp.mean(y, axis=(0, 1, 2), keepdims=True)
    var = jnp.mean((y - mean) ** 2, axis=(0, 1, 2), keepdims=True)
    y = (y - mean) * lax.rsqrt(var + 1e-5) * gamma + beta
    y = y * jnp.tanh(jax.nn.softplus(y))
    z = jnp.einsum("nhwc,cd->nhwd", y, w2_io.astype(jnp.float32),
                   precision=lax.Precision.HIGHEST) + b2
    return jnp.transpose(z, (0, 3, 1, 2))


# --------------------------------- main ---------------------------------------
if __name__ == "__main__":
    # Small shapes consistent with the module: three pyramid scales, each head
    # branch input has feature_channels[i] // 2 channels.
    feature_channels = [16, 32, 64]     # scaled down from [256, 512, 1024]
    target_channel = 255
    spatial = [16, 8, 4]                # scaled down from 76 / 38 / 19
    batch = 2

    key = jax.random.PRNGKey(0)
    features, params = [], []
    for fc, sp in zip(feature_channels, spatial):
        cin = fc // 2
        key, kx, kw1, kg, kb, kw2, kb2 = jax.random.split(key, 7)
        features.append(jax.random.normal(kx, (batch, cin, sp, sp), jnp.float32))
        params.append(dict(
            w1=0.1 * jax.random.normal(kw1, (3, 3, cin, fc), jnp.float32),  # HWIO
            gamma=1.0 + 0.1 * jax.random.normal(kg, (fc,), jnp.float32),
            beta=0.1 * jax.random.normal(kb, (fc,), jnp.float32),
            w2=0.1 * jax.random.normal(kw2, (fc, target_channel), jnp.float32),
            b2=0.1 * jax.random.normal(kb2, (target_channel,), jnp.float32),
        ))

    outs = yolo4_head_forward(features, params)
    outs = [jax.block_until_ready(o) for o in outs]

    # Verify against a plain-JAX f32 reference (kernel uses bf16 MXU operands,
    # so the tolerance is a bit looser than pure-f32).
    for x, p, o, sp in zip(features, params, outs, spatial):
        assert o.shape == (batch, target_channel, sp, sp), o.shape
        ref = _reference_scale(x, p["w1"], p["gamma"], p["beta"], p["w2"], p["b2"])
        max_err = float(jnp.max(jnp.abs(o - ref)))
        mean_err = float(jnp.mean(jnp.abs(o - ref)))
        assert max_err < 5e-2, f"scale {sp}: max abs err {max_err}"
        assert mean_err < 1e-2, f"scale {sp}: mean abs err {mean_err}"

    print("KERNEL_OK")
</pallas_src>

<mosaic_0001>
module attributes {stable_mosaic.version = 11 : i64} {
  func.func @_conv3x3_stats_kernel(%arg0: i32, %arg1: memref<1x18x18x8xbf16, #tpu.memory_space<vmem>>, %arg2: memref<72x16xbf16, #tpu.memory_space<vmem>>, %arg3: memref<256x16xf32, #tpu.memory_space<vmem>>, %arg4: memref<1x1x16xf32, #tpu.memory_space<vmem>>, %arg5: memref<1x1x16xf32, #tpu.memory_space<vmem>>) attributes {dimension_semantics = [#tpu.dimension_semantics<parallel>], iteration_bounds = array<i64: 2>, scalar_prefetch = 0 : i64, scratch_operands = 0 : i64, tpu.core_type = #tpu.core_type<tc>, window_params = [{transform_indices = @transform_0, window_bounds = array<i64: 1, 18, 18, 8>}, {pipeline_mode = #tpu.pipeline_mode<synchronous>, transform_indices = @transform_1, window_bounds = array<i64: 72, 16>}, {transform_indices = @transform_2, window_bounds = array<i64: 256, 16>}, {transform_indices = @transform_3, window_bounds = array<i64: 1, 1, 16>}, {transform_indices = @transform_4, window_bounds = array<i64: 1, 1, 16>}]} {
    %c0 = arith.constant 0 : index
    %c0_0 = arith.constant 0 : index
    %c0_1 = arith.constant 0 : index
    %c0_2 = arith.constant 0 : index
    %0 = vector.load %arg1[%c0, %c0_0, %c0_1, %c0_2] : memref<1x18x18x8xbf16, #tpu.memory_space<vmem>>, vector<1x18x18x8xbf16>
    %1 = vector.extract_strided_slice %0 {offsets = [0, 0, 0, 0], sizes = [1, 18, 16, 8], strides = [1, 1, 1, 1]} : vector<1x18x18x8xbf16> to vector<1x18x16x8xbf16>
    %2 = vector.extract_strided_slice %0 {offsets = [0, 0, 1, 0], sizes = [1, 18, 16, 8], strides = [1, 1, 1, 1]} : vector<1x18x18x8xbf16> to vector<1x18x16x8xbf16>
    %3 = vector.extract_strided_slice %0 {offsets = [0, 0, 2, 0], sizes = [1, 18, 16, 8], strides = [1, 1, 1, 1]} : vector<1x18x18x8xbf16> to vector<1x18x16x8xbf16>
    %4 = vector.extract_strided_slice %1 {offsets = [0, 0, 0, 0], sizes = [1, 16, 16, 8], strides = [1, 1, 1, 1]} : vector<1x18x16x8xbf16> to vector<1x16x16x8xbf16>
    %5 = vector.shape_cast %4 : vector<1x16x16x8xbf16> to vector<256x8xbf16>
    %6 = vector.extract_strided_slice %2 {offsets = [0, 0, 0, 0], sizes = [1, 16, 16, 8], strides = [1, 1, 1, 1]} : vector<1x18x16x8xbf16> to vector<1x16x16x8xbf16>
    %7 = vector.shape_cast %6 : vector<1x16x16x8xbf16> to vector<256x8xbf16>
    %8 = vector.extract_strided_slice %3 {offsets = [0, 0, 0, 0], sizes = [1, 16, 16, 8], strides = [1, 1, 1, 1]} : vector<1x18x16x8xbf16> to vector<1x16x16x8xbf16>
    %9 = vector.shape_cast %8 : vector<1x16x16x8xbf16> to vector<256x8xbf16>
    %10 = vector.extract_strided_slice %1 {offsets = [0, 1, 0, 0], sizes = [1, 16, 16, 8], strides = [1, 1, 1, 1]} : vector<1x18x16x8xbf16> to vector<1x16x16x8xbf16>
    %11 = vector.shape_cast %10 : vector<1x16x16x8xbf16> to vector<256x8xbf16>
    %12 = vector.extract_strided_slice %2 {offsets = [0, 1, 0, 0], sizes = [1, 16, 16, 8], strides = [1, 1, 1, 1]} : vector<1x18x16x8xbf16> to vector<1x16x16x8xbf16>
    %13 = vector.shape_cast %12 : vector<1x16x16x8xbf16> to vector<256x8xbf16>
    %14 = vector.extract_strided_slice %3 {offsets = [0, 1, 0, 0], sizes = [1, 16, 16, 8], strides = [1, 1, 1, 1]} : vector<1x18x16x8xbf16> to vector<1x16x16x8xbf16>
    %15 = vector.shape_cast %14 : vector<1x16x16x8xbf16> to vector<256x8xbf16>
    %16 = vector.extract_strided_slice %1 {offsets = [0, 2, 0, 0], sizes = [1, 16, 16, 8], strides = [1, 1, 1, 1]} : vector<1x18x16x8xbf16> to vector<1x16x16x8xbf16>
    %17 = vector.shape_cast %16 : vector<1x16x16x8xbf16> to vector<256x8xbf16>
    %18 = vector.extract_strided_slice %2 {offsets = [0, 2, 0, 0], sizes = [1, 16, 16, 8], strides = [1, 1, 1, 1]} : vector<1x18x16x8xbf16> to vector<1x16x16x8xbf16>
    %19 = vector.shape_cast %18 : vector<1x16x16x8xbf16> to vector<256x8xbf16>
    %20 = vector.extract_strided_slice %3 {offsets = [0, 2, 0, 0], sizes = [1, 16, 16, 8], strides = [1, 1, 1, 1]} : vector<1x18x16x8xbf16> to vector<1x16x16x8xbf16>
    %21 = vector.shape_cast %20 : vector<1x16x16x8xbf16> to vector<256x8xbf16>
    %22 = tpu.concatenate %5, %7, %9, %11, %13, %15, %17, %19, %21 in 1 : vector<256x8xbf16>, vector<256x8xbf16>, vector<256x8xbf16>, vector<256x8xbf16>, vector<256x8xbf16>, vector<256x8xbf16>, vector<256x8xbf16>, vector<256x8xbf16>, vector<256x8xbf16> -> vector<256x72xbf16>
    %c0_3 = arith.constant 0 : index
    %c0_4 = arith.constant 0 : index
    %23 = vector.load %arg2[%c0_3, %c0_4] : memref<72x16xbf16, #tpu.memory_space<vmem>>, vector<72x16xbf16>
    %cst = arith.constant dense<0.000000e+00> : vector<256x16xf32>
    %24 = tpu.matmul %22, %23, %cst {dimension_numbers = #tpu.dot_dimension_numbers<[1], [0], [0], [1], [0, 0, 1, 1], [], []>} : vector<256x72xbf16>, vector<72x16xbf16>, vector<256x16xf32> -> vector<256x16xf32>
    %c0_5 = arith.constant 0 : index
    %c0_6 = arith.constant 0 : index
    %25 = vector.load %arg3[%c0_5, %c0_6] : memref<256x16xf32, #tpu.memory_space<vmem>>, vector<256x16xf32>
    tpu.vector_store %arg3[%c0_5, %c0_6], %24 {strides = array<i32>} : memref<256x16xf32, #tpu.memory_space<vmem>>, vector<256x16xf32>,
    %cst_7 = arith.constant dense<0.000000e+00> : vector<16xf32>
    %26 = vector.multi_reduction <add>, %24, %cst_7 [0] : vector<256x16xf32> to vector<16xf32>
    %27 = vector.shape_cast %26 : vector<16xf32> to vector<1x1x16xf32>
    %c0_8 = arith.constant 0 : index
    %c0_9 = arith.constant 0 : index
    %c0_10 = arith.constant 0 : index
    %28 = vector.load %arg4[%c0_8, %c0_9, %c0_10] : memref<1x1x16xf32, #tpu.memory_space<vmem>>, vector<1x1x16xf32>
    tpu.vector_store %arg4[%c0_8, %c0_9, %c0_10], %27 {strides = array<i32>} : memref<1x1x16xf32, #tpu.memory_space<vmem>>, vector<1x1x16xf32>,
    %29 = arith.mulf %24, %24 : vector<256x16xf32>
    %cst_11 = arith.constant dense<0.000000e+00> : vector<16xf32>
    %30 = vector.multi_reduction <add>, %29, %cst_11 [0] : vector<256x16xf32> to vector<16xf32>
    %31 = vector.shape_cast %30 : vector<16xf32> to vector<1x1x16xf32>
    %c0_12 = arith.constant 0 : index
    %c0_13 = arith.constant 0 : index
    %c0_14 = arith.constant 0 : index
    %32 = vector.load %arg5[%c0_12, %c0_13, %c0_14] : memref<1x1x16xf32, #tpu.memory_space<vmem>>, vector<1x1x16xf32>
    tpu.vector_store %arg5[%c0_12, %c0_13, %c0_14], %31 {strides = array<i32>} : memref<1x1x16xf32, #tpu.memory_space<vmem>>, vector<1x1x16xf32>,
    return
  }
  func.func @transform_0(%arg0: i32) -> (i32, i32, i32, i32) {
    %c0_i32 = arith.constant 0 : i32
    %c0_i32_0 = arith.constant 0 : i32
    %c0_i32_1 = arith.constant 0 : i32
    %c0_i32_2 = arith.constant 0 : i32
    return %arg0, %c0_i32, %c0_i32_0, %c0_i32_1 : i32, i32, i32, i32
  }
  func.func @transform_1(%arg0: i32) -> (i32, i32) {
    %c0_i32 = arith.constant 0 : i32
    %c0_i32_0 = arith.constant 0 : i32
    %c0_i32_1 = arith.constant 0 : i32
    return %c0_i32, %c0_i32_0 : i32, i32
  }
  func.func @transform_2(%arg0: i32) -> (i32, i32) {
    %c0_i32 = arith.constant 0 : i32
    %c0_i32_0 = arith.constant 0 : i32
    return %arg0, %c0_i32 : i32, i32
  }
  func.func @transform_3(%arg0: i32) -> (i32, i32, i32) {
    %c0_i32 = arith.constant 0 : i32
    %c0_i32_0 = arith.constant 0 : i32
    %c0_i32_1 = arith.constant 0 : i32
    return %arg0, %c0_i32, %c0_i32_0 : i32, i32, i32
  }
  func.func @transform_4(%arg0: i32) -> (i32, i32, i32) {
    %c0_i32 = arith.constant 0 : i32
    %c0_i32_0 = arith.constant 0 : i32
    %c0_i32_1 = arith.constant 0 : i32
    return %arg0, %c0_i32, %c0_i32_0 : i32, i32, i32
  }
}

module attributes {stable_mosaic.version = 11 : i64} {
  func.func @_bn_mish_conv1x1_kernel(%arg0: i32, %arg1: memref<256x16xf32, #tpu.memory_space<vmem>>, %arg2: memref<1x16xf32, #tpu.memory_space<vmem>>, %arg3: memref<1x16xf32, #tpu.memory_space<vmem>>, %arg4: memref<16x256xbf16, #tpu.memory_space<vmem>>, %arg5: memref<1x256xf32, #tpu.memory_space<vmem>>, %arg6: memref<256x256xf32, #tpu.memory_space<vmem>>) attributes {dimension_semantics = [#tpu.dimension_semantics<parallel>], iteration_bounds = array<i64: 2>, scalar_prefetch = 0 : i64, scratch_operands = 0 : i64, tpu.core_type = #tpu.core_type<tc>, window_params = [{transform_indices = @transform_0, window_bounds = array<i64: 256, 16>}, {pipeline_mode = #tpu.pipeline_mode<synchronous>, transform_indices = @transform_1, window_bounds = array<i64: 1, 16>}, {pipeline_mode = #tpu.pipeline_mode<synchronous>, transform_indices = @transform_2, window_bounds = array<i64: 1, 16>}, {pipeline_mode = #tpu.pipeline_mode<synchronous>, transform_indices = @transform_3, window_bounds = array<i64: 16, 256>}, {pipeline_mode = #tpu.pipeline_mode<synchronous>, transform_indices = @transform_4, window_bounds = array<i64: 1, 256>}, {transform_indices = @transform_5, window_bounds = array<i64: 256, 256>}]} {
    %c0 = arith.constant 0 : index
    %c0_0 = arith.constant 0 : index
    %0 = vector.load %arg1[%c0, %c0_0] : memref<256x16xf32, #tpu.memory_space<vmem>>, vector<256x16xf32>
    %c0_1 = arith.constant 0 : index
    %c0_2 = arith.constant 0 : index
    %1 = vector.load %arg2[%c0_1, %c0_2] : memref<1x16xf32, #tpu.memory_space<vmem>>, vector<1x16xf32>
    %2 = vector.broadcast %1 : vector<1x16xf32> to vector<256x16xf32>
    %3 = arith.mulf %0, %2 : vector<256x16xf32>
    %c0_3 = arith.constant 0 : index
    %c0_4 = arith.constant 0 : index
    %4 = vector.load %arg3[%c0_3, %c0_4] : memref<1x16xf32, #tpu.memory_space<vmem>>, vector<1x16xf32>
    %5 = vector.broadcast %4 : vector<1x16xf32> to vector<256x16xf32>
    %6 = arith.addf %3, %5 : vector<256x16xf32>
    %7 = math.absf %6 : vector<256x16xf32>
    %cst = arith.constant 0.000000e+00 : f32
    %8 = vector.broadcast %cst : f32 to vector<256x16xf32>
    %9 = arith.subf %8, %7 : vector<256x16xf32>
    %10 = math.exp %9 : vector<256x16xf32>
    %cst_5 = arith.constant 2.000000e+00 : f32
    %11 = vector.broadcast %cst_5 : f32 to vector<256x16xf32>
    %12 = arith.addf %10, %11 : vector<256x16xf32>
    %13 = arith.mulf %10, %12 : vector<256x16xf32>
    %cst_6 = arith.constant 0.000000e+00 : f32
    %14 = vector.broadcast %cst_6 : f32 to vector<256x16xf32>
    %15 = arith.cmpf oge, %6, %14 : vector<256x16xf32>
    %cst_7 = arith.constant 2.000000e+00 : f32
    %16 = vector.broadcast %cst_7 : f32 to vector<256x16xf32>
    %17 = arith.mulf %16, %10 : vector<256x16xf32>
    %cst_8 = arith.constant 1.000000e+00 : f32
    %18 = vector.broadcast %cst_8 : f32 to vector<256x16xf32>
    %19 = arith.addf %18, %17 : vector<256x16xf32>
    %20 = arith.select %15, %19, %13 : vector<256x16xi1>, vector<256x16xf32>
    %cst_9 = arith.constant 0.000000e+00 : f32
    %21 = vector.broadcast %cst_9 : f32 to vector<256x16xf32>
    %22 = arith.cmpf oge, %6, %21 : vector<256x16xf32>
    %cst_10 = arith.constant 2.000000e+00 : f32
    %23 = vector.broadcast %cst_10 : f32 to vector<256x16xf32>
    %24 = arith.mulf %23, %10 : vector<256x16xf32>
    %25 = arith.mulf %24, %10 : vector<256x16xf32>
    %cst_11 = arith.constant 2.000000e+00 : f32
    %26 = vector.broadcast %cst_11 : f32 to vector<256x16xf32>
    %27 = arith.select %22, %25, %26 : vector<256x16xi1>, vector<256x16xf32>
    %28 = arith.addf %20, %27 : vector<256x16xf32>
    %29 = tpu.reciprocal %28 {approx = true} : vector<256x16xf32> -> vector<256x16xf32>
    %30 = arith.mulf %20, %29 : vector<256x16xf32>
    %31 = arith.mulf %6, %30 : vector<256x16xf32>
    %32 = arith.truncf %31 : vector<256x16xf32> to vector<256x16xbf16>
    %c0_12 = arith.constant 0 : index
    %c0_13 = arith.constant 0 : index
    %33 = vector.load %arg4[%c0_12, %c0_13] : memref<16x256xbf16, #tpu.memory_space<vmem>>, vector<16x256xbf16>
    %cst_14 = arith.constant dense<0.000000e+00> : vector<256x256xf32>
    %34 = tpu.matmul %32, %33, %cst_14 {dimension_numbers = #tpu.dot_dimension_numbers<[1], [0], [0], [1], [0, 0, 1, 1], [], []>} : vector<256x16xbf16>, vector<16x256xbf16>, vector<256x256xf32> -> vector<256x256xf32>
    %c0_15 = arith.constant 0 : index
    %c0_16 = arith.constant 0 : index
    %35 = vector.load %arg5[%c0_15, %c0_16] : memref<1x256xf32, #tpu.memory_space<vmem>>, vector<1x256xf32>
    %36 = vector.broadcast %35 : vector<1x256xf32> to vector<256x256xf32>
    %37 = arith.addf %34, %36 : vector<256x256xf32>
    %c0_17 = arith.constant 0 : index
    %c0_18 = arith.constant 0 : index
    %38 = vector.load %arg6[%c0_17, %c0_18] : memref<256x256xf32, #tpu.memory_space<vmem>>, vector<256x256xf32>
    tpu.vector_store %arg6[%c0_17, %c0_18], %37 {strides = array<i32>} : memref<256x256xf32, #tpu.memory_space<vmem>>, vector<256x256xf32>,
    return
  }
  func.func @transform_0(%arg0: i32) -> (i32, i32) {
    %c0_i32 = arith.constant 0 : i32
    %c0_i32_0 = arith.constant 0 : i32
    return %arg0, %c0_i32 : i32, i32
  }
  func.func @transform_1(%arg0: i32) -> (i32, i32) {
    %c0_i32 = arith.constant 0 : i32
    %c0_i32_0 = arith.constant 0 : i32
    %c0_i32_1 = arith.constant 0 : i32
    return %c0_i32, %c0_i32_0 : i32, i32
  }
  func.func @transform_2(%arg0: i32) -> (i32, i32) {
    %c0_i32 = arith.constant 0 : i32
    %c0_i32_0 = arith.constant 0 : i32
    %c0_i32_1 = arith.constant 0 : i32
    return %c0_i32, %c0_i32_0 : i32, i32
  }
  func.func @transform_3(%arg0: i32) -> (i32, i32) {
    %c0_i32 = arith.constant 0 : i32
    %c0_i32_0 = arith.constant 0 : i32
    %c0_i32_1 = arith.constant 0 : i32
    return %c0_i32, %c0_i32_0 : i32, i32
  }
  func.func @transform_4(%arg0: i32) -> (i32, i32) {
    %c0_i32 = arith.constant 0 : i32
    %c0_i32_0 = arith.constant 0 : i32
    %c0_i32_1 = arith.constant 0 : i32
    return %c0_i32, %c0_i32_0 : i32, i32
  }
  func.func @transform_5(%arg0: i32) -> (i32, i32) {
    %c0_i32 = arith.constant 0 : i32
    %c0_i32_0 = arith.constant 0 : i32
    return %arg0, %c0_i32 : i32, i32
  }
}

</mosaic_0001>

<llo_original>
// kernel: yolo_head_scale.3
$region0: #{yolo_head_scale.3}
  #allocation0 [shape = 'u32[]', space=smem, size = 0x4, offset = 0x4, fixed_abs, tag = 'smem constant byte address 0x4 - core index']
  #allocation1 [shape = 'u32[72,128]{1,0:T(1,128)}', space=vmem, size = 0x9000, scoped, tag = 'internal scratch']
  %s0 = inlined_call_operand.vmem [shape: f32[512,16], index: 0, kind: input, shape index: {}]
  %s1 = inlined_call_operand.vmem [shape: f32[1,16], index: 1, kind: input, shape index: {}]
  %s2 = inlined_call_operand.vmem [shape: f32[1,16], index: 2, kind: input, shape index: {}]
  %s3 = inlined_call_operand.vmem [shape: bf16[16,256], index: 3, kind: input, shape index: {}]
  %s4 = inlined_call_operand.vmem [shape: f32[1,256], index: 4, kind: input, shape index: {}]
  %s5 = inlined_call_operand.vmem [shape: f32[512,256], index: 5, kind: output, shape index: {}]
  %s6 = sld [smem:[#allocation0]]
  $region53: #{yolo_head_scale.3} parent=0
    _
  %s8 = ssub.s32 1, %s6
  %s9 = scalar_select 0, %s8, %s6
  loop: start=0, step=1, limit=4
  $region2: #{yolo_head_scale.3} parent=0 // loop_pre_header
    _
  $region3: #{yolo_head_scale.3} parent=0 // loop_header
    %s11 = sphi 0, %s15
    %p12 = scmp.ge.s32.totalorder %s11, 4
    %s21 = sphi 0, %s23
    %s24 = sphi 0, %s21
    %s25 = sphi 0, %s24
    %s41 = sphi 0, %s25
    %s45 = sphi 0, %s45
    %s47 = sphi 0, %s45
    %s48 = sphi 0, %s47
    %s62 = sphi 0, %s48
    %s66 = sphi 0, %s66
    %s68 = sphi 0, %s66
    %s69 = sphi 0, %s68
    %s83 = sphi 0, %s69
    %s87 = sphi 0, %s87
    %s89 = sphi 0, %s87
    %s90 = sphi 0, %s89
    %s104 = sphi 0, %s90
    %s108 = sphi 0, %s108
    %s110 = sphi 0, %s108
    %s111 = sphi 0, %s110
    %s125 = sphi 0, %s111
    %s131 = sphi 0, %s133
    %s134 = sphi 0, %s131
    %s135 = sphi 0, %s134
    %s151 = sphi 0, %s135
  $region4: #{yolo_head_scale.3} parent=0 // loop_header_branch
    %14 = sbr.rel (%p12) target = $region8
  $region5: #{yolo_head_scale.3} parent=0 // loop_body
    %s16 = ssub.s32 %s11, 1
    %s17 = ssub.s32 %s11, 2
    %s18 = sadd.s32 %s11, 1
    %s19 = ssub.s32 %s11, %s18
    %p20 = scmp.eq.s32.totalorder %s19, 0
    %s22 = sadd.s32 %s21, 1
    %s23 = scalar_select %p20, %s21, %s22
    %p26 = pneg %p20
    %p27 = scmp.eq.s32.totalorder %s11, 1
    %p28 = por %p26, %p27
    %p29 = scmp.ne.s32.totalorder %s21, %s24
    %p30 = scmp.eq.s32.totalorder %s11, 0
    %p31 = por %p29, %p30
    %p32 = scmp.ne.s32.totalorder %s21, %s24
    %p33 = scmp.eq.s32.totalorder %s16, 1
    %p34 = por %p32, %p33
    %p35 = scmp.ne.s32.totalorder %s24, %s25
    %p36 = scmp.eq.s32.totalorder %s16, 0
    %p37 = por %p35, %p36
    %p38 = scmp.ne.s32.totalorder %s24, %s25
    %p39 = scmp.eq.s32.totalorder %s17, 1
    %p40 = por %p38, %p39
    %p42 = scmp.ne.s32.totalorder %s25, %s41
    %p43 = scmp.eq.s32.totalorder %s17, 0
    %p44 = por %p42, %p43
    %s46 = sadd.s32 %s45, 1
    %p49 = scmp.eq.s32.totalorder %s11, 1
    %p50 = scmp.ne.s32.totalorder %s45, %s47
    %p51 = scmp.eq.s32.totalorder %s11, 0
    %p52 = por %p50, %p51
    %p53 = scmp.ne.s32.totalorder %s45, %s47
    %p54 = scmp.eq.s32.totalorder %s16, 1
    %p55 = por %p53, %p54
    %p56 = scmp.ne.s32.totalorder %s47, %s48
    %p57 = scmp.eq.s32.totalorder %s16, 0
    %p58 = por %p56, %p57
    %p59 = scmp.ne.s32.totalorder %s47, %s48
    %p60 = scmp.eq.s32.totalorder %s17, 1
    %p61 = por %p59, %p60
    %p63 = scmp.ne.s32.totalorder %s48, %s62
    %p64 = scmp.eq.s32.totalorder %s17, 0
    %p65 = por %p63, %p64
    %s67 = sadd.s32 %s66, 1
    %p70 = scmp.eq.s32.totalorder %s11, 1
    %p71 = scmp.ne.s32.totalorder %s66, %s68
    %p72 = scmp.eq.s32.totalorder %s11, 0
    %p73 = por %p71, %p72
    %p74 = scmp.ne.s32.totalorder %s66, %s68
    %p75 = scmp.eq.s32.totalorder %s16, 1
    %p76 = por %p74, %p75
    %p77 = scmp.ne.s32.totalorder %s68, %s69
    %p78 = scmp.eq.s32.totalorder %s16, 0
    %p79 = por %p77, %p78
    %p80 = scmp.ne.s32.totalorder %s68, %s69
    %p81 = scmp.eq.s32.totalorder %s17, 1
    %p82 = por %p80, %p81
    %p84 = scmp.ne.s32.totalorder %s69, %s83
    %p85 = scmp.eq.s32.totalorder %s17, 0
    %p86 = por %p84, %p85
    %s88 = sadd.s32 %s87, 1
    %p91 = scmp.eq.s32.totalorder %s11, 1
    %p92 = scmp.ne.s32.totalorder %s87, %s89
    %p93 = scmp.eq.s32.totalorder %s11, 0
    %p94 = por %p92, %p93
    %p95 = scmp.ne.s32.totalorder %s87, %s89
    %p96 = scmp.eq.s32.totalorder %s16, 1
    %p97 = por %p95, %p96
    %p98 = scmp.ne.s32.totalorder %s89, %s90
    %p99 = scmp.eq.s32.totalorder %s16, 0
    %p100 = por %p98, %p99
    %p101 = scmp.ne.s32.totalorder %s89, %s90
    %p102 = scmp.eq.s32.totalorder %s17, 1
    %p103 = por %p101, %p102
    %p105 = scmp.ne.s32.totalorder %s90, %s104
    %p106 = scmp.eq.s32.totalorder %s17, 0
    %p107 = por %p105, %p106
    %s109 = sadd.s32 %s108, 1
    %p112 = scmp.eq.s32.totalorder %s11, 1
    %p113 = scmp.ne.s32.totalorder %s108, %s110
    %p114 = scmp.eq.s32.totalorder %s11, 0
    %p115 = por %p113, %p114
    %p116 = scmp.ne.s32.totalorder %s108, %s110
    %p117 = scmp.eq.s32.totalorder %s16, 1
    %p118 = por %p116, %p117
    %p119 = scmp.ne.s32.totalorder %s110, %s111
    %p120 = scmp.eq.s32.totalorder %s16, 0
    %p121 = por %p119, %p120
    %p122 = scmp.ne.s32.totalorder %s110, %s111
    %p123 = scmp.eq.s32.totalorder %s17, 1
    %p124 = por %p122, %p123
    %p126 = scmp.ne.s32.totalorder %s111, %s125
    %p127 = scmp.eq.s32.totalorder %s17, 0
    %p128 = por %p126, %p127
    %s129 = ssub.s32 %s11, %s18
    %p130 = scmp.eq.s32.totalorder %s129, 0
    %s132 = sadd.s32 %s131, 1
    %s133 = scalar_select %p130, %s131, %s132
    %p136 = pneg %p130
    %p137 = scmp.eq.s32.totalorder %s11, 1
    %p138 = por %p136, %p137
    %p139 = scmp.ne.s32.totalorder %s131, %s134
    %p140 = scmp.eq.s32.totalorder %s11, 0
    %p141 = por %p139, %p140
    %p142 = scmp.ne.s32.totalorder %s131, %s134
    %p143 = scmp.eq.s32.totalorder %s16, 1
    %p144 = por %p142, %p143
    %p145 = scmp.ne.s32.totalorder %s134, %s135
    %p146 = scmp.eq.s32.totalorder %s16, 0
    %p147 = por %p145, %p146
    %p148 = scmp.ne.s32.totalorder %s134, %s135
    %p149 = scmp.eq.s32.totalorder %s17, 1
    %p150 = por %p148, %p149
    %p152 = scmp.ne.s32.totalorder %s135, %s151
    %p153 = scmp.eq.s32.totalorder %s17, 0
    %p154 = por %p152, %p153
    %p155 = scmp.le.s32.totalorder 1, %s11
    %p156 = scmp.lt.s32.totalorder %s11, 3
    %p157 = pnand %p155, %p156
    %p158 = pneg %p157
    // Predicated region
    $region9: #{yolo_head_scale.3} parent=5 // pred_check
      _
    $region10: #{yolo_head_scale.3} parent=5 // pred_check_branch
      %160 = sbr.rel (%p157) target = $region12
    $region11: #{yolo_head_scale.3} parent=5 // pred_region
      %s161 = ssub.s32 %s11, 1
      // Predicated region
      $region13: #{yolo_head_scale.3} parent=11 // pred_check
        %p162 = pneg %p58
      $region14: #{yolo_head_scale.3} parent=11 // pred_check_branch
        %164 = sbr.rel (%p162) target = $region16
      $region15: #{yolo_head_scale.3} parent=11 // pred_region
        _
      $region16: #{yolo_head_scale.3} parent=11 // pred_fallthru
        _
      // Predicated region
      $region17: #{yolo_head_scale.3} parent=11 // pred_check
        %p165 = pneg %p79
      $region18: #{yolo_head_scale.3} parent=11 // pred_check_branch
        %167 = sbr.rel (%p165) target = $region20
      $region19: #{yolo_head_scale.3} parent=11 // pred_region
        _
      $region20: #{yolo_head_scale.3} parent=11 // pred_fallthru
        _
      // Predicated region
      $region21: #{yolo_head_scale.3} parent=11 // pred_check
        %p168 = pneg %p100
      $region22: #{yolo_head_scale.3} parent=11 // pred_check_branch
        %170 = sbr.rel (%p168) target = $region24
      $region23: #{yolo_head_scale.3} parent=11 // pred_region
        _
      $region24: #{yolo_head_scale.3} parent=11 // pred_fallthru
        _
      // Predicated region
      $region25: #{yolo_head_scale.3} parent=11 // pred_check
        %p171 = pneg %p121
      $region26: #{yolo_head_scale.3} parent=11 // pred_check_branch
        %173 = sbr.rel (%p171) target = $region28
      $region27: #{yolo_head_scale.3} parent=11 // pred_region
        _
      $region28: #{yolo_head_scale.3} parent=11 // pred_fallthru
        _
    $region12: #{yolo_head_scale.3} parent=5 // pred_fallthru
      _
    %p174 = scmp.lt.s32.totalorder %s11, 2
    // Predicated region
    $region29: #{yolo_head_scale.3} parent=5 // pred_check
      %p175 = pneg %p174
    $region30: #{yolo_head_scale.3} parent=5 // pred_check_branch
      %177 = sbr.rel (%p175) target = $region32
    $region31: #{yolo_head_scale.3} parent=5 // pred_region
      // Predicated region
      $region33: #{yolo_head_scale.3} parent=31 // pred_check
        %p178 = pneg %p31
      $region34: #{yolo_head_scale.3} parent=31 // pred_check_branch
        %180 = sbr.rel (%p178) target = $region36
      $region35: #{yolo_head_scale.3} parent=31 // pred_region
        %s181 = smul.u32 32, %s11
        %p182 = scmp.lt.s32.totalorder %s181, 63
        %s183 = scalar_select %p182, %s181, 63
        %s184 = smul.addr %s183, 8
        %s185 = scalar_lea.vmem %s0, %s184
        %s186 = smul.u32 32, %s11
      $region36: #{yolo_head_scale.3} parent=31 // pred_fallthru
        _
    $region32: #{yolo_head_scale.3} parent=5 // pred_fallthru
      _
    %p187 = scmp.le.s32.totalorder 1, %s11
    %p188 = scmp.lt.s32.totalorder %s11, 3
    %p189 = pnand %p187, %p188
    %p190 = pneg %p189
    // Predicated region
    $region37: #{yolo_head_scale.3} parent=5 // pred_check
      _
    $region38: #{yolo_head_scale.3} parent=5 // pred_check_branch
      %192 = sbr.rel (%p189) target = $region40
    $region39: #{yolo_head_scale.3} parent=5 // pred_region
      %s193 = ssub.s32 %s11, 1
      %s194 = smul.u32 32, %s16
      %p195 = scmp.lt.s32.totalorder %s194, 63
      %s196 = scalar_select %p195, %s194, 63
      %s197 = smul.addr %s196, 8
      %s198 = scalar_lea.vmem %s0, %s197
      %p199 = pneg %p37
      %p200 = pneg %p34
      %p201 = pneg %p58
      %p202 = pneg %p55
      %p203 = pneg %p79
      %p204 = pneg %p76
      %p205 = pneg %p100
      %p206 = pneg %p97
      %p207 = pneg %p121
      %p208 = pneg %p118
      %p209 = pneg %p147
      %p210 = pneg %p144
      %s211 = smul.u32 32, %s16
      %p212 = scmp.lt.s32.totalorder %s211, 63
      %s213 = scalar_select %p212, %s211, 63
      %s214 = smul.addr %s213, 2
      %s215 = smul.addr %s214, 8
      %s216 = scalar_lea.vmem %s5, %s215
      %s217 = smul.u32 32, %s16
      %p218 = scmp.lt.s32.totalorder %s217, 63
      %s219 = scalar_select %p218, %s217, 63
      %s220 = smul.addr %s219, 8
      %s221 = scalar_lea.vmem %s0, %s220
      %s222 = smul.u32 32, %s16
      %s223 = smul.u32 32, %s16
      %p224 = scmp.lt.s32.totalorder %s223, 63
      %s225 = scalar_select %p224, %s223, 63
      %s226 = smul.addr %s225, 2
      %s227 = smul.addr %s226, 8
      %s228 = scalar_lea.vmem %s5, %s227
      %s229 = smul.u32 32, %s16
      %v231 = vld [vmem:[%s221] sm:$0xff]
      %v232 = vld [vmem:[%s221 + $0x8] sm:$0xff]
      %v233 = vld [vmem:[%s221 + $0x10] sm:$0xff]
      %v234 = vld [vmem:[%s221 + $0x18] sm:$0xff]
      %v235 = vld [vmem:[%s221 + $0x20] sm:$0xff]
      %v236 = vld [vmem:[%s221 + $0x28] sm:$0xff]
      %v237 = vld [vmem:[%s221 + $0x30] sm:$0xff]
      %v238 = vld [vmem:[%s221 + $0x38] sm:$0xff]
      %v239 = vld [vmem:[%s221 + $0x40] sm:$0xff]
      %v240 = vld [vmem:[%s221 + $0x48] sm:$0xff]
      %v241 = vld [vmem:[%s221 + $0x50] sm:$0xff]
      %v242 = vld [vmem:[%s221 + $0x58] sm:$0xff]
      %v243 = vld [vmem:[%s221 + $0x60] sm:$0xff]
      %v244 = vld [vmem:[%s221 + $0x68] sm:$0xff]
      %v245 = vld [vmem:[%s221 + $0x70] sm:$0xff]
      %v246 = vld [vmem:[%s221 + $0x78] sm:$0xff]
      %v247 = vld [vmem:[%s221 + $0x80] sm:$0xff]
      %v248 = vld [vmem:[%s221 + $0x88] sm:$0xff]
      %v249 = vld [vmem:[%s221 + $0x90] sm:$0xff]
      %v250 = vld [vmem:[%s221 + $0x98] sm:$0xff]
      %v251 = vld [vmem:[%s221 + $0xa0] sm:$0xff]
      %v252 = vld [vmem:[%s221 + $0xa8] sm:$0xff]
      %v253 = vld [vmem:[%s221 + $0xb0] sm:$0xff]
      %v254 = vld [vmem:[%s221 + $0xb8] sm:$0xff]
      %v255 = vld [vmem:[%s221 + $0xc0] sm:$0xff]
      %v256 = vld [vmem:[%s221 + $0xc8] sm:$0xff]
      %v257 = vld [vmem:[%s221 + $0xd0] sm:$0xff]
      %v258 = vld [vmem:[%s221 + $0xd8] sm:$0xff]
      %v259 = vld [vmem:[%s221 + $0xe0] sm:$0xff]
      %v260 = vld [vmem:[%s221 + $0xe8] sm:$0xff]
      %v261 = vld [vmem:[%s221 + $0xf0] sm:$0xff]
      %v262 = vld [vmem:[%s221 + $0xf8] sm:$0xff]
      %v263 = vld [vmem:[%s1] sm:$0x1]
      %v265 = vperm.slane %v263, 0
      %v267 = vmul.f32 %v231, %v265
      %v268 = vmul.f32 %v232, %v265
      %v269 = vmul.f32 %v233, %v265
      %v270 = vmul.f32 %v234, %v265
      %v271 = vmul.f32 %v235, %v265
      %v272 = vmul.f32 %v236, %v265
      %v273 = vmul.f32 %v237, %v265
      %v274 = vmul.f32 %v238, %v265
      %v275 = vmul.f32 %v239, %v265
      %v276 = vmul.f32 %v240, %v265
      %v277 = vmul.f32 %v241, %v265
      %v278 = vmul.f32 %v242, %v265
      %v279 = vmul.f32 %v243, %v265
      %v280 = vmul.f32 %v244, %v265
      %v281 = vmul.f32 %v245, %v265
      %v282 = vmul.f32 %v246, %v265
      %v283 = vmul.f32 %v247, %v265
      %v284 = vmul.f32 %v248, %v265
      %v285 = vmul.f32 %v249, %v265
      %v286 = vmul.f32 %v250, %v265
      %v287 = vmul.f32 %v251, %v265
      %v288 = vmul.f32 %v252, %v265
      %v289 = vmul.f32 %v253, %v265
      %v290 = vmul.f32 %v254, %v265
      %v291 = vmul.f32 %v255, %v265
      %v292 = vmul.f32 %v256, %v265
      %v293 = vmul.f32 %v257, %v265
      %v294 = vmul.f32 %v258, %v265
      %v295 = vmul.f32 %v259, %v265
      %v296 = vmul.f32 %v260, %v265
      %v297 = vmul.f32 %v261, %v265
      %v298 = vmul.f32 %v262, %v265
      %v299 = vld [vmem:[%s2] sm:$0x1]
      %v301 = vperm.slane %v299, 0
      %v303 = vadd.f32 %v267, %v301
      %v304 = vadd.f32 %v268, %v301
      %v305 = vadd.f32 %v269, %v301
      %v306 = vadd.f32 %v270, %v301
      %v307 = vadd.f32 %v271, %v301
      %v308 = vadd.f32 %v272, %v301
      %v309 = vadd.f32 %v273, %v301
      %v310 = vadd.f32 %v274, %v301
      %v311 = vadd.f32 %v275, %v301
      %v312 = vadd.f32 %v276, %v301
      %v313 = vadd.f32 %v277, %v301
      %v314 = vadd.f32 %v278, %v301
      %v315 = vadd.f32 %v279, %v301
      %v316 = vadd.f32 %v280, %v301
      %v317 = vadd.f32 %v281, %v301
      %v318 = vadd.f32 %v282, %v301
      %v319 = vadd.f32 %v283, %v301
      %v320 = vadd.f32 %v284, %v301
      %v321 = vadd.f32 %v285, %v301
      %v322 = vadd.f32 %v286, %v301
      %v323 = vadd.f32 %v287, %v301
      %v324 = vadd.f32 %v288, %v301
      %v325 = vadd.f32 %v289, %v301
      %v326 = vadd.f32 %v290, %v301
      %v327 = vadd.f32 %v291, %v301
      %v328 = vadd.f32 %v292, %v301
      %v329 = vadd.f32 %v293, %v301
      %v330 = vadd.f32 %v294, %v301
      %v331 = vadd.f32 %v295, %v301
      %v332 = vadd.f32 %v296, %v301
      %v333 = vadd.f32 %v297, %v301
      %v334 = vadd.f32 %v298, %v301
      %v335 = vand.u32 2147483647, %v303
      %v336 = vand.u32 2147483647, %v304
      %v337 = vand.u32 2147483647, %v305
      %v338 = vand.u32 2147483647, %v306
      %v339 = vand.u32 2147483647, %v307
      %v340 = vand.u32 2147483647, %v308
      %v341 = vand.u32 2147483647, %v309
      %v342 = vand.u32 2147483647, %v310
      %v343 = vand.u32 2147483647, %v311
      %v344 = vand.u32 2147483647, %v312
      %v345 = vand.u32 2147483647, %v313
      %v346 = vand.u32 2147483647, %v314
      %v347 = vand.u32 2147483647, %v315
      %v348 = vand.u32 2147483647, %v316
      %v349 = vand.u32 2147483647, %v317
      %v350 = vand.u32 2147483647, %v318
      %v351 = vand.u32 2147483647, %v319
      %v352 = vand.u32 2147483647, %v320
      %v353 = vand.u32 2147483647, %v321
      %v354 = vand.u32 2147483647, %v322
      %v355 = vand.u32 2147483647, %v323
      %v356 = vand.u32 2147483647, %v324
      %v357 = vand.u32 2147483647, %v325
      %v358 = vand.u32 2147483647, %v326
      %v359 = vand.u32 2147483647, %v327
      %v360 = vand.u32 2147483647, %v328
      %v361 = vand.u32 2147483647, %v329
      %v362 = vand.u32 2147483647, %v330
      %v363 = vand.u32 2147483647, %v331
      %v364 = vand.u32 2147483647, %v332
      %v365 = vand.u32 2147483647, %v333
      %v366 = vand.u32 2147483647, %v334
      %v367 = vsub.f32 0.0, %v335
      %v368 = vsub.f32 0.0, %v336
      %v369 = vsub.f32 0.0, %v337
      %v370 = vsub.f32 0.0, %v338
      %v371 = vsub.f32 0.0, %v339
      %v372 = vsub.f32 0.0, %v340
      %v373 = vsub.f32 0.0, %v341
      %v374 = vsub.f32 0.0, %v342
      %v375 = vsub.f32 0.0, %v343
      %v376 = vsub.f32 0.0, %v344
      %v377 = vsub.f32 0.0, %v345
      %v378 = vsub.f32 0.0, %v346
      %v379 = vsub.f32 0.0, %v347
      %v380 = vsub.f32 0.0, %v348
      %v381 = vsub.f32 0.0, %v349
      %v382 = vsub.f32 0.0, %v350
      %v383 = vsub.f32 0.0, %v351
      %v384 = vsub.f32 0.0, %v352
      %v385 = vsub.f32 0.0, %v353
      %v386 = vsub.f32 0.0, %v354
      %v387 = vsub.f32 0.0, %v355
      %v388 = vsub.f32 0.0, %v356
      %v389 = vsub.f32 0.0, %v357
      %v390 = vsub.f32 0.0, %v358
      %v391 = vsub.f32 0.0, %v359
      %v392 = vsub.f32 0.0, %v360
      %v393 = vsub.f32 0.0, %v361
      %v394 = vsub.f32 0.0, %v362
      %v395 = vsub.f32 0.0, %v363
      %v396 = vsub.f32 0.0, %v364
      %v397 = vsub.f32 0.0, %v365
      %v398 = vsub.f32 0.0, %v366
      %v399 = vmul.f32 %v367, 1.442695
      %v400 = vpow.pop %v399
      %v401 = vmul.f32 %v368, 1.442695
      %v402 = vpow.pop %v401
      %v403 = vmul.f32 %v369, 1.442695
      %v404 = vpow.pop %v403
      %v405 = vmul.f32 %v370, 1.442695
      %v406 = vpow.pop %v405
      %v407 = vmul.f32 %v371, 1.442695
      %v408 = vpow.pop %v407
      %v409 = vmul.f32 %v372, 1.442695
      %v410 = vpow.pop %v409
      %v411 = vmul.f32 %v373, 1.442695
      %v412 = vpow.pop %v411
      %v413 = vmul.f32 %v374, 1.442695
      %v414 = vpow.pop %v413
      %v415 = vmul.f32 %v375, 1.442695
      %v416 = vpow.pop %v415
      %v417 = vmul.f32 %v376, 1.442695
      %v418 = vpow.pop %v417
      %v419 = vmul.f32 %v377, 1.442695
      %v420 = vpow.pop %v419
      %v421 = vmul.f32 %v378, 1.442695
      %v422 = vpow.pop %v421
      %v423 = vmul.f32 %v379, 1.442695
      %v424 = vpow.pop %v423
      %v425 = vmul.f32 %v380, 1.442695
      %v426 = vpow.pop %v425
      %v427 = vmul.f32 %v381, 1.442695
      %v428 = vpow.pop %v427
      %v429 = vmul.f32 %v382, 1.442695
      %v430 = vpow.pop %v429
      %v431 = vmul.f32 %v383, 1.442695
      %v432 = vpow.pop %v431
      %v433 = vmul.f32 %v384, 1.442695
      %v434 = vpow.pop %v433
      %v435 = vmul.f32 %v385, 1.442695
      %v436 = vpow.pop %v435
      %v437 = vmul.f32 %v386, 1.442695
      %v438 = vpow.pop %v437
      %v439 = vmul.f32 %v387, 1.442695
      %v440 = vpow.pop %v439
      %v441 = vmul.f32 %v388, 1.442695
      %v442 = vpow.pop %v441
      %v443 = vmul.f32 %v389, 1.442695
      %v444 = vpow.pop %v443
      %v445 = vmul.f32 %v390, 1.442695
      %v446 = vpow.pop %v445
      %v447 = vmul.f32 %v391, 1.442695
      %v448 = vpow.pop %v447
      %v449 = vmul.f32 %v392, 1.442695
      %v450 = vpow.pop %v449
      %v451 = vmul.f32 %v393, 1.442695
      %v452 = vpow.pop %v451
      %v453 = vmul.f32 %v394, 1.442695
      %v454 = vpow.pop %v453
      %v455 = vmul.f32 %v395, 1.442695
      %v456 = vpow.pop %v455
      %v457 = vmul.f32 %v396, 1.442695
      %v458 = vpow.pop %v457
      %v459 = vmul.f32 %v397, 1.442695
      %v460 = vpow.pop %v459
      %v461 = vmul.f32 %v398, 1.442695
      %v462 = vpow.pop %v461
      %v463 = vadd.f32 %v400, 2.0
      %v464 = vadd.f32 %v402, 2.0
      %v465 = vadd.f32 %v404, 2.0
      %v466 = vadd.f32 %v406, 2.0
      %v467 = vadd.f32 %v408, 2.0
      %v468 = vadd.f32 %v410, 2.0
      %v469 = vadd.f32 %v412, 2.0
      %v470 = vadd.f32 %v414, 2.0
      %v471 = vadd.f32 %v416, 2.0
      %v472 = vadd.f32 %v418, 2.0
      %v473 = vadd.f32 %v420, 2.0
      %v474 = vadd.f32 %v422, 2.0
      %v475 = vadd.f32 %v424, 2.0
      %v476 = vadd.f32 %v426, 2.0
      %v477 = vadd.f32 %v428, 2.0
      %v478 = vadd.f32 %v430, 2.0
      %v479 = vadd.f32 %v432, 2.0
      %v480 = vadd.f32 %v434, 2.0
      %v481 = vadd.f32 %v436, 2.0
      %v482 = vadd.f32 %v438, 2.0
      %v483 = vadd.f32 %v440, 2.0
      %v484 = vadd.f32 %v442, 2.0
      %v485 = vadd.f32 %v444, 2.0
      %v486 = vadd.f32 %v446, 2.0
      %v487 = vadd.f32 %v448, 2.0
      %v488 = vadd.f32 %v450, 2.0
      %v489 = vadd.f32 %v452, 2.0
      %v490 = vadd.f32 %v454, 2.0
      %v491 = vadd.f32 %v456, 2.0
      %v492 = vadd.f32 %v458, 2.0
      %v493 = vadd.f32 %v460, 2.0
      %v494 = vadd.f32 %v462, 2.0
      %v495 = vmul.f32 %v400, %v463
      %v496 = vmul.f32 %v402, %v464
      %v497 = vmul.f32 %v404, %v465
      %v498 = vmul.f32 %v406, %v466
      %v499 = vmul.f32 %v408, %v467
      %v500 = vmul.f32 %v410, %v468
      %v501 = vmul.f32 %v412, %v469
      %v502 = vmul.f32 %v414, %v470
      %v503 = vmul.f32 %v416, %v471
      %v504 = vmul.f32 %v418, %v472
      %v505 = vmul.f32 %v420, %v473
      %v506 = vmul.f32 %v422, %v474
      %v507 = vmul.f32 %v424, %v475
      %v508 = vmul.f32 %v426, %v476
      %v509 = vmul.f32 %v428, %v477
      %v510 = vmul.f32 %v430, %v478
      %v511 = vmul.f32 %v432, %v479
      %v512 = vmul.f32 %v434, %v480
      %v513 = vmul.f32 %v436, %v481
      %v514 = vmul.f32 %v438, %v482
      %v515 = vmul.f32 %v440, %v483
      %v516 = vmul.f32 %v442, %v484
      %v517 = vmul.f32 %v444, %v485
      %v518 = vmul.f32 %v446, %v486
      %v519 = vmul.f32 %v448, %v487
      %v520 = vmul.f32 %v450, %v488
      %v521 = vmul.f32 %v452, %v489
      %v522 = vmul.f32 %v454, %v490
      %v523 = vmul.f32 %v456, %v491
      %v524 = vmul.f32 %v458, %v492
      %v525 = vmul.f32 %v460, %v493
      %v526 = vmul.f32 %v462, %v494
      %vm527 = vcmp.ge.f32.partialorder %v303, 0.0
      %vm528 = vcmp.ge.f32.partialorder %v304, 0.0
      %vm529 = vcmp.ge.f32.partialorder %v305, 0.0
      %vm530 = vcmp.ge.f32.partialorder %v306, 0.0
      %vm531 = vcmp.ge.f32.partialorder %v307, 0.0
      %vm532 = vcmp.ge.f32.partialorder %v308, 0.0
      %vm533 = vcmp.ge.f32.partialorder %v309, 0.0
      %vm534 = vcmp.ge.f32.partialorder %v310, 0.0
      %vm535 = vcmp.ge.f32.partialorder %v311, 0.0
      %vm536 = vcmp.ge.f32.partialorder %v312, 0.0
      %vm537 = vcmp.ge.f32.partialorder %v313, 0.0
      %vm538 = vcmp.ge.f32.partialorder %v314, 0.0
      %vm539 = vcmp.ge.f32.partialorder %v315, 0.0
      %vm540 = vcmp.ge.f32.partialorder %v316, 0.0
      %vm541 = vcmp.ge.f32.partialorder %v317, 0.0
      %vm542 = vcmp.ge.f32.partialorder %v318, 0.0
      %vm543 = vcmp.ge.f32.partialorder %v319, 0.0
      %vm544 = vcmp.ge.f32.partialorder %v320, 0.0
      %vm545 = vcmp.ge.f32.partialorder %v321, 0.0
      %vm546 = vcmp.ge.f32.partialorder %v322, 0.0
      %vm547 = vcmp.ge.f32.partialorder %v323, 0.0
      %vm548 = vcmp.ge.f32.partialorder %v324, 0.0
      %vm549 = vcmp.ge.f32.partialorder %v325, 0.0
      %vm550 = vcmp.ge.f32.partialorder %v326, 0.0
      %vm551 = vcmp.ge.f32.partialorder %v327, 0.0
      %vm552 = vcmp.ge.f32.partialorder %v328, 0.0
      %vm553 = vcmp.ge.f32.partialorder %v329, 0.0
      %vm554 = vcmp.ge.f32.partialorder %v330, 0.0
      %vm555 = vcmp.ge.f32.partialorder %v331, 0.0
      %vm556 = vcmp.ge.f32.partialorder %v332, 0.0
      %vm557 = vcmp.ge.f32.partialorder %v333, 0.0
      %vm558 = vcmp.ge.f32.partialorder %v334, 0.0
      %v559 = vmul.f32 %v400, 2.0
      %v560 = vmul.f32 %v402, 2.0
      %v561 = vmul.f32 %v404, 2.0
      %v562 = vmul.f32 %v406, 2.0
      %v563 = vmul.f32 %v408, 2.0
      %v564 = vmul.f32 %v410, 2.0
      %v565 = vmul.f32 %v412, 2.0
      %v566 = vmul.f32 %v414, 2.0
      %v567 = vmul.f32 %v416, 2.0
      %v568 = vmul.f32 %v418, 2.0
      %v569 = vmul.f32 %v420, 2.0
      %v570 = vmul.f32 %v422, 2.0
      %v571 = vmul.f32 %v424, 2.0
      %v572 = vmul.f32 %v426, 2.0
      %v573 = vmul.f32 %v428, 2.0
      %v574 = vmul.f32 %v430, 2.0
      %v575 = vmul.f32 %v432, 2.0
      %v576 = vmul.f32 %v434, 2.0
      %v577 = vmul.f32 %v436, 2.0
      %v578 = vmul.f32 %v438, 2.0
      %v579 = vmul.f32 %v440, 2.0
      %v580 = vmul.f32 %v442, 2.0
      %v581 = vmul.f32 %v444, 2.0
      %v582 = vmul.f32 %v446, 2.0
      %v583 = vmul.f32 %v448, 2.0
      %v584 = vmul.f32 %v450, 2.0
      %v585 = vmul.f32 %v452, 2.0
      %v586 = vmul.f32 %v454, 2.0
      %v587 = vmul.f32 %v456, 2.0
      %v588 = vmul.f32 %v458, 2.0
      %v589 = vmul.f32 %v460, 2.0
      %v590 = vmul.f32 %v462, 2.0
      %v591 = vadd.f32 %v559, 1.0
      %v592 = vadd.f32 %v560, 1.0
      %v593 = vadd.f32 %v561, 1.0
      %v594 = vadd.f32 %v562, 1.0
      %v595 = vadd.f32 %v563, 1.0
      %v596 = vadd.f32 %v564, 1.0
      %v597 = vadd.f32 %v565, 1.0
      %v598 = vadd.f32 %v566, 1.0
      %v599 = vadd.f32 %v567, 1.0
      %v600 = vadd.f32 %v568, 1.0
      %v601 = vadd.f32 %v569, 1.0
      %v602 = vadd.f32 %v570, 1.0
      %v603 = vadd.f32 %v571, 1.0
      %v604 = vadd.f32 %v572, 1.0
      %v605 = vadd.f32 %v573, 1.0
      %v606 = vadd.f32 %v574, 1.0
      %v607 = vadd.f32 %v575, 1.0
      %v608 = vadd.f32 %v576, 1.0
      %v609 = vadd.f32 %v577, 1.0
      %v610 = vadd.f32 %v578, 1.0
      %v611 = vadd.f32 %v579, 1.0
      %v612 = vadd.f32 %v580, 1.0
      %v613 = vadd.f32 %v581, 1.0
      %v614 = vadd.f32 %v582, 1.0
      %v615 = vadd.f32 %v583, 1.0
      %v616 = vadd.f32 %v584, 1.0
      %v617 = vadd.f32 %v585, 1.0
      %v618 = vadd.f32 %v586, 1.0
      %v619 = vadd.f32 %v587, 1.0
      %v620 = vadd.f32 %v588, 1.0
      %v621 = vadd.f32 %v589, 1.0
      %v622 = vadd.f32 %v590, 1.0
      %v623 = vsel %vm527, %v591, %v495
      %v624 = vsel %vm528, %v592, %v496
      %v625 = vsel %vm529, %v593, %v497
      %v626 = vsel %vm530, %v594, %v498
      %v627 = vsel %vm531, %v595, %v499
      %v628 = vsel %vm532, %v596, %v500
      %v629 = vsel %vm533, %v597, %v501
      %v630 = vsel %vm534, %v598, %v502
      %v631 = vsel %vm535, %v599, %v503
      %v632 = vsel %vm536, %v600, %v504
      %v633 = vsel %vm537, %v601, %v505
      %v634 = vsel %vm538, %v602, %v506
      %v635 = vsel %vm539, %v603, %v507
      %v636 = vsel %vm540, %v604, %v508
      %v637 = vsel %vm541, %v605, %v509
      %v638 = vsel %vm542, %v606, %v510
      %v639 = vsel %vm543, %v607, %v511
      %v640 = vsel %vm544, %v608, %v512
      %v641 = vsel %vm545, %v609, %v513
      %v642 = vsel %vm546, %v610, %v514
      %v643 = vsel %vm547, %v611, %v515
      %v644 = vsel %vm548, %v612, %v516
      %v645 = vsel %vm549, %v613, %v517
      %v646 = vsel %vm550, %v614, %v518
      %v647 = vsel %vm551, %v615, %v519
      %v648 = vsel %vm552, %v616, %v520
      %v649 = vsel %vm553, %v617, %v521
      %v650 = vsel %vm554, %v618, %v522
      %v651 = vsel %vm555, %v619, %v523
      %v652 = vsel %vm556, %v620, %v524
      %v653 = vsel %vm557, %v621, %v525
      %v654 = vsel %vm558, %v622, %v526
      %v655 = vmul.f32 %v559, %v400
      %v656 = vmul.f32 %v560, %v402
      %v657 = vmul.f32 %v561, %v404
      %v658 = vmul.f32 %v562, %v406
      %v659 = vmul.f32 %v563, %v408
      %v660 = vmul.f32 %v564, %v410
      %v661 = vmul.f32 %v565, %v412
      %v662 = vmul.f32 %v566, %v414
      %v663 = vmul.f32 %v567, %v416
      %v664 = vmul.f32 %v568, %v418
      %v665 = vmul.f32 %v569, %v420
      %v666 = vmul.f32 %v570, %v422
      %v667 = vmul.f32 %v571, %v424
      %v668 = vmul.f32 %v572, %v426
      %v669 = vmul.f32 %v573, %v428
      %v670 = vmul.f32 %v574, %v430
      %v671 = vmul.f32 %v575, %v432
      %v672 = vmul.f32 %v576, %v434
      %v673 = vmul.f32 %v577, %v436
      %v674 = vmul.f32 %v578, %v438
      %v675 = vmul.f32 %v579, %v440
      %v676 = vmul.f32 %v580, %v442
      %v677 = vmul.f32 %v581, %v444
      %v678 = vmul.f32 %v582, %v446
      %v679 = vmul.f32 %v583, %v448
      %v680 = vmul.f32 %v584, %v450
      %v681 = vmul.f32 %v585, %v452
      %v682 = vmul.f32 %v586, %v454
      %v683 = vmul.f32 %v587, %v456
      %v684 = vmul.f32 %v588, %v458
      %v685 = vmul.f32 %v589, %v460
      %v686 = vmul.f32 %v590, %v462
      %v687 = vsel %vm527, %v655, 2.0
      %v688 = vsel %vm528, %v656, 2.0
      %v689 = vsel %vm529, %v657, 2.0
      %v690 = vsel %vm530, %v658, 2.0
      %v691 = vsel %vm531, %v659, 2.0
      %v692 = vsel %vm532, %v660, 2.0
      %v693 = vsel %vm533, %v661, 2.0
      %v694 = vsel %vm534, %v662, 2.0
      %v695 = vsel %vm535, %v663, 2.0
      %v696 = vsel %vm536, %v664, 2.0
      %v697 = vsel %vm537, %v665, 2.0
      %v698 = vsel %vm538, %v666, 2.0
      %v699 = vsel %vm539, %v667, 2.0
      %v700 = vsel %vm540, %v668, 2.0
      %v701 = vsel %vm541, %v669, 2.0
      %v702 = vsel %vm542, %v670, 2.0
      %v703 = vsel %vm543, %v671, 2.0
      %v704 = vsel %vm544, %v672, 2.0
      %v705 = vsel %vm545, %v673, 2.0
      %v706 = vsel %vm546, %v674, 2.0
      %v707 = vsel %vm547, %v675, 2.0
      %v708 = vsel %vm548, %v676, 2.0
      %v709 = vsel %vm549, %v677, 2.0
      %v710 = vsel %vm550, %v678, 2.0
      %v711 = vsel %vm551, %v679, 2.0
      %v712 = vsel %vm552, %v680, 2.0
      %v713 = vsel %vm553, %v681, 2.0
      %v714 = vsel %vm554, %v682, 2.0
      %v715 = vsel %vm555, %v683, 2.0
      %v716 = vsel %vm556, %v684, 2.0
      %v717 = vsel %vm557, %v685, 2.0
      %v718 = vsel %vm558, %v686, 2.0
      %v719 = vadd.f32 %v623, %v687
      %v720 = vadd.f32 %v624, %v688
      %v721 = vadd.f32 %v625, %v689
      %v722 = vadd.f32 %v626, %v690
      %v723 = vadd.f32 %v627, %v691
      %v724 = vadd.f32 %v628, %v692
      %v725 = vadd.f32 %v629, %v693
      %v726 = vadd.f32 %v630, %v694
      %v727 = vadd.f32 %v631, %v695
      %v728 = vadd.f32 %v632, %v696
      %v729 = vadd.f32 %v633, %v697
      %v730 = vadd.f32 %v634, %v698
      %v731 = vadd.f32 %v635, %v699
      %v732 = vadd.f32 %v636, %v700
      %v733 = vadd.f32 %v637, %v701
      %v734 = vadd.f32 %v638, %v702
      %v735 = vadd.f32 %v639, %v703
      %v736 = vadd.f32 %v640, %v704
      %v737 = vadd.f32 %v641, %v705
      %v738 = vadd.f32 %v642, %v706
      %v739 = vadd.f32 %v643, %v707
      %v740 = vadd.f32 %v644, %v708
      %v741 = vadd.f32 %v645, %v709
      %v742 = vadd.f32 %v646, %v710
      %v743 = vadd.f32 %v647, %v711
      %v744 = vadd.f32 %v648, %v712
      %v745 = vadd.f32 %v649, %v713
      %v746 = vadd.f32 %v650, %v714
      %v747 = vadd.f32 %v651, %v715
      %v748 = vadd.f32 %v652, %v716
      %v749 = vadd.f32 %v653, %v717
      %v750 = vadd.f32 %v654, %v718
      %v751 = vrcp.pop %v719
      %v752 = vrcp.pop %v720
      %v753 = vrcp.pop %v721
      %v754 = vrcp.pop %v722
      %v755 = vrcp.pop %v723
      %v756 = vrcp.pop %v724
      %v757 = vrcp.pop %v725
      %v758 = vrcp.pop %v726
      %v759 = vrcp.pop %v727
      %v760 = vrcp.pop %v728
      %v761 = vrcp.pop %v729
      %v762 = vrcp.pop %v730
      %v763 = vrcp.pop %v731
      %v764 = vrcp.pop %v732
      %v765 = vrcp.pop %v733
      %v766 = vrcp.pop %v734
      %v767 = vrcp.pop %v735
      %v768 = vrcp.pop %v736
      %v769 = vrcp.pop %v737
      %v770 = vrcp.pop %v738
      %v771 = vrcp.pop %v739
      %v772 = vrcp.pop %v740
      %v773 = vrcp.pop %v741
      %v774 = vrcp.pop %v742
      %v775 = vrcp.pop %v743
      %v776 = vrcp.pop %v744
      %v777 = vrcp.pop %v745
      %v778 = vrcp.pop %v746
      %v779 = vrcp.pop %v747
      %v780 = vrcp.pop %v748
      %v781 = vrcp.pop %v749
      %v782 = vrcp.pop %v750
      %v783 = vmul.f32 %v623, %v751
      %v784 = vmul.f32 %v624, %v752
      %v785 = vmul.f32 %v625, %v753
      %v786 = vmul.f32 %v626, %v754
      %v787 = vmul.f32 %v627, %v755
      %v788 = vmul.f32 %v628, %v756
      %v789 = vmul.f32 %v629, %v757
      %v790 = vmul.f32 %v630, %v758
      %v791 = vmul.f32 %v631, %v759
      %v792 = vmul.f32 %v632, %v760
      %v793 = vmul.f32 %v633, %v761
      %v794 = vmul.f32 %v634, %v762
      %v795 = vmul.f32 %v635, %v763
      %v796 = vmul.f32 %v636, %v764
      %v797 = vmul.f32 %v637, %v765
      %v798 = vmul.f32 %v638, %v766
      %v799 = vmul.f32 %v639, %v767
      %v800 = vmul.f32 %v640, %v768
      %v801 = vmul.f32 %v641, %v769
      %v802 = vmul.f32 %v642, %v770
      %v803 = vmul.f32 %v643, %v771
      %v804 = vmul.f32 %v644, %v772
      %v805 = vmul.f32 %v645, %v773
      %v806 = vmul.f32 %v646, %v774
      %v807 = vmul.f32 %v647, %v775
      %v808 = vmul.f32 %v648, %v776
      %v809 = vmul.f32 %v649, %v777
      %v810 = vmul.f32 %v650, %v778
      %v811 = vmul.f32 %v651, %v779
      %v812 = vmul.f32 %v652, %v780
      %v813 = vmul.f32 %v653, %v781
      %v814 = vmul.f32 %v654, %v782
      %v815 = vmul.f32 %v303, %v783
      %v816 = vmul.f32 %v304, %v784
      %v817 = vmul.f32 %v305, %v785
      %v818 = vmul.f32 %v306, %v786
      %v819 = vmul.f32 %v307, %v787
      %v820 = vmul.f32 %v308, %v788
      %v821 = vmul.f32 %v309, %v789
      %v822 = vmul.f32 %v310, %v790
      %v823 = vmul.f32 %v311, %v791
      %v824 = vmul.f32 %v312, %v792
      %v825 = vmul.f32 %v313, %v793
      %v826 = vmul.f32 %v314, %v794
      %v827 = vmul.f32 %v315, %v795
      %v828 = vmul.f32 %v316, %v796
      %v829 = vmul.f32 %v317, %v797
      %v830 = vmul.f32 %v318, %v798
      %v831 = vmul.f32 %v319, %v799
      %v832 = vmul.f32 %v320, %v800
      %v833 = vmul.f32 %v321, %v801
      %v834 = vmul.f32 %v322, %v802
      %v835 = vmul.f32 %v323, %v803
      %v836 = vmul.f32 %v324, %v804
      %v837 = vmul.f32 %v325, %v805
      %v838 = vmul.f32 %v326, %v806
      %v839 = vmul.f32 %v327, %v807
      %v840 = vmul.f32 %v328, %v808
      %v841 = vmul.f32 %v329, %v809
      %v842 = vmul.f32 %v330, %v810
      %v843 = vmul.f32 %v331, %v811
      %v844 = vmul.f32 %v332, %v812
      %v845 = vmul.f32 %v333, %v813
      %v846 = vmul.f32 %v334, %v814
      %v847 = vpack.c.bf16 %v816, %v815
      %v848 = vpack.c.bf16 %v818, %v817
      %v849 = vpack.c.bf16 %v820, %v819
      %v850 = vpack.c.bf16 %v822, %v821
      %v851 = vpack.c.bf16 %v824, %v823
      %v852 = vpack.c.bf16 %v826, %v825
      %v853 = vpack.c.bf16 %v828, %v827
      %v854 = vpack.c.bf16 %v830, %v829
      %v855 = vpack.c.bf16 %v832, %v831
      %v856 = vpack.c.bf16 %v834, %v833
      %v857 = vpack.c.bf16 %v836, %v835
      %v858 = vpack.c.bf16 %v838, %v837
      %v859 = vpack.c.bf16 %v840, %v839
      %v860 = vpack.c.bf16 %v842, %v841
      %v861 = vpack.c.bf16 %v844, %v843
      %v862 = vpack.c.bf16 %v846, %v845
      %v863 = vld [vmem:[%s3] sm:$0xff]
      %v864 = vld [vmem:[%s3 + $0x8] sm:$0xff]
      %v865 = vld [vmem:[%s4] sm:$0x3]
      %v867 = vperm.slane %v865, 0
      %v868 = vperm.slane %v865, 1
      %v873 = vunpack.c.l.b16 %v863
      %v874 = vunpack.c.h.b16 %v863
      %v875 = vunpack.c.l.b16 %v864
      %v876 = vunpack.c.h.b16 %v864
      %v877 = vpack.c.b16 %v875, %v873
      %v878 = vpack.c.b16 %v876, %v874
      %vm881 = vcmask 130048
      %v883 = vsel %vm881, %v847, 0
      %v886 = vsel %vm881, %v848, 0
      %v889 = vsel %vm881, %v849, 0
      %v892 = vsel %vm881, %v850, 0
      %v895 = vsel %vm881, %v851, 0
      %v898 = vsel %vm881, %v852, 0
      %v901 = vsel %vm881, %v853, 0
      %v904 = vsel %vm881, %v854, 0
      %v907 = vsel %vm881, %v855, 0
      %v910 = vsel %vm881, %v856, 0
      %v913 = vsel %vm881, %v857, 0
      %v916 = vsel %vm881, %v858, 0
      %v919 = vsel %vm881, %v859, 0
      %v922 = vsel %vm881, %v860, 0
      %v925 = vsel %vm881, %v861, 0
      %v928 = vsel %vm881, %v862, 0
      %930 = vmatpush.bf16.msra.mxu0 0
      %931 = vmatpush.bf16.msra.mxu0 0
      %932 = vmatpush.bf16.msra.mxu0 0
      %933 = vmatpush.bf16.msra.mxu0 0
      %934 = vmatpush.bf16.msra.mxu0 0
      %935 = vmatpush.bf16.msra.mxu0 0
      %936 = vmatpush.bf16.msra.mxu0 0
      %937 = vmatpush.bf16.msra.mxu0 %v877
      %938 = vmatmul.bf16.gmra.mxu0 %v883
      %v939 = vpop.f32.mrf.mxu0
      %v940 = vadd.f32 %v867, %v939
      %v941 = vpop.f32.mrf.mxu0
      %v942 = vadd.f32 %v867, %v941
      %943 = vmatmul.bf16.gmra.mxu0 %v886
      %v944 = vpop.f32.mrf.mxu0
      %v945 = vadd.f32 %v867, %v944
      %v946 = vpop.f32.mrf.mxu0
      %v947 = vadd.f32 %v867, %v946
      %948 = vmatmul.bf16.gmra.mxu0 %v889
      %v949 = vpop.f32.mrf.mxu0
      %v950 = vadd.f32 %v867, %v949
      %v951 = vpop.f32.mrf.mxu0
      %v952 = vadd.f32 %v867, %v951
      %953 = vmatmul.bf16.gmra.mxu0 %v892
      %v954 = vpop.f32.mrf.mxu0
      %v955 = vadd.f32 %v867, %v954
      %v956 = vpop.f32.mrf.mxu0
      %v957 = vadd.f32 %v867, %v956
      %958 = vmatmul.bf16.gmra.mxu0 %v895
      %v959 = vpop.f32.mrf.mxu0
      %v960 = vadd.f32 %v867, %v959
      %v961 = vpop.f32.mrf.mxu0
      %v962 = vadd.f32 %v867, %v961
      %963 = vmatmul.bf16.gmra.mxu0 %v898
      %v964 = vpop.f32.mrf.mxu0
      %v965 = vadd.f32 %v867, %v964
      %v966 = vpop.f32.mrf.mxu0
      %v967 = vadd.f32 %v867, %v966
      %968 = vmatmul.bf16.gmra.mxu0 %v901
      %v969 = vpop.f32.mrf.mxu0
      %v970 = vadd.f32 %v867, %v969
      %v971 = vpop.f32.mrf.mxu0
      %v972 = vadd.f32 %v867, %v971
      %973 = vmatmul.bf16.gmra.mxu0 %v904
      %v974 = vpop.f32.mrf.mxu0
      %v975 = vadd.f32 %v867, %v974
      %v976 = vpop.f32.mrf.mxu0
      %v977 = vadd.f32 %v867, %v976
      %978 = vmatmul.bf16.gmra.mxu0 %v907
      %v979 = vpop.f32.mrf.mxu0
      %v980 = vadd.f32 %v867, %v979
      %v981 = vpop.f32.mrf.mxu0
      %v982 = vadd.f32 %v867, %v981
      %983 = vmatmul.bf16.gmra.mxu0 %v910
      %v984 = vpop.f32.mrf.mxu0
      %v985 = vadd.f32 %v867, %v984
      %v986 = vpop.f32.mrf.mxu0
      %v987 = vadd.f32 %v867, %v986
      %988 = vmatmul.bf16.gmra.mxu0 %v913
      %v989 = vpop.f32.mrf.mxu0
      %v990 = vadd.f32 %v867, %v989
      %v991 = vpop.f32.mrf.mxu0
      %v992 = vadd.f32 %v867, %v991
      %993 = vmatmul.bf16.gmra.mxu0 %v916
      %v994 = vpop.f32.mrf.mxu0
      %v995 = vadd.f32 %v867, %v994
      %v996 = vpop.f32.mrf.mxu0
      %v997 = vadd.f32 %v867, %v996
      %998 = vmatmul.bf16.gmra.mxu0 %v919
      %v999 = vpop.f32.mrf.mxu0
      %v1000 = vadd.f32 %v867, %v999
      %v1001 = vpop.f32.mrf.mxu0
      %v1002 = vadd.f32 %v867, %v1001
      %1003 = vmatmul.bf16.gmra.mxu0 %v922
      %v1004 = vpop.f32.mrf.mxu0
      %v1005 = vadd.f32 %v867, %v1004
      %v1006 = vpop.f32.mrf.mxu0
      %v1007 = vadd.f32 %v867, %v1006
      %1008 = vmatmul.bf16.gmra.mxu0 %v925
      %v1009 = vpop.f32.mrf.mxu0
      %v1010 = vadd.f32 %v867, %v1009
      %v1011 = vpop.f32.mrf.mxu0
      %v1012 = vadd.f32 %v867, %v1011
      %1013 = vmatmul.bf16.gmra.mxu0 %v928
      %v1014 = vpop.f32.mrf.mxu0
      %v1015 = vadd.f32 %v867, %v1014
      %v1016 = vpop.f32.mrf.mxu0
      %v1017 = vadd.f32 %v867, %v1016
      %1018 = vdwg.mxu0
      %1019 = vmatpush.bf16.msra.mxu0 0
      %1020 = vmatpush.bf16.msra.mxu0 0
      %1021 = vmatpush.bf16.msra.mxu0 0
      %1022 = vmatpush.bf16.msra.mxu0 0
      %1023 = vmatpush.bf16.msra.mxu0 0
      %1024 = vmatpush.bf16.msra.mxu0 0
      %1025 = vmatpush.bf16.msra.mxu0 0
      %1026 = vmatpush.bf16.msra.mxu0 %v878
      %1027 = vmatmul.bf16.gmra.mxu0 %v883
      %v1028 = vpop.f32.mrf.mxu0
      %v1029 = vadd.f32 %v868, %v1028
      %v1030 = vpop.f32.mrf.mxu0
      %v1031 = vadd.f32 %v868, %v1030
      %1032 = vmatmul.bf16.gmra.mxu0 %v886
      %v1033 = vpop.f32.mrf.mxu0
      %v1034 = vadd.f32 %v868, %v1033
      %v1035 = vpop.f32.mrf.mxu0
      %v1036 = vadd.f32 %v868, %v1035
      %1037 = vmatmul.bf16.gmra.mxu0 %v889
      %v1038 = vpop.f32.mrf.mxu0
      %v1039 = vadd.f32 %v868, %v1038
      %v1040 = vpop.f32.mrf.mxu0
      %v1041 = vadd.f32 %v868, %v1040
      %1042 = vmatmul.bf16.gmra.mxu0 %v892
      %v1043 = vpop.f32.mrf.mxu0
      %v1044 = vadd.f32 %v868, %v1043
      %v1045 = vpop.f32.mrf.mxu0
      %v1046 = vadd.f32 %v868, %v1045
      %1047 = vmatmul.bf16.gmra.mxu0 %v895
      %v1048 = vpop.f32.mrf.mxu0
      %v1049 = vadd.f32 %v868, %v1048
      %v1050 = vpop.f32.mrf.mxu0
      %v1051 = vadd.f32 %v868, %v1050
      %1052 = vmatmul.bf16.gmra.mxu0 %v898
      %v1053 = vpop.f32.mrf.mxu0
      %v1054 = vadd.f32 %v868, %v1053
      %v1055 = vpop.f32.mrf.mxu0
      %v1056 = vadd.f32 %v868, %v1055
      %1057 = vmatmul.bf16.gmra.mxu0 %v901
      %v1058 = vpop.f32.mrf.mxu0
      %v1059 = vadd.f32 %v868, %v1058
      %v1060 = vpop.f32.mrf.mxu0
      %v1061 = vadd.f32 %v868, %v1060
      %1062 = vmatmul.bf16.gmra.mxu0 %v904
      %v1063 = vpop.f32.mrf.mxu0
      %v1064 = vadd.f32 %v868, %v1063
      %v1065 = vpop.f32.mrf.mxu0
      %v1066 = vadd.f32 %v868, %v1065
      %1067 = vmatmul.bf16.gmra.mxu0 %v907
      %v1068 = vpop.f32.mrf.mxu0
      %v1069 = vadd.f32 %v868, %v1068
      %v1070 = vpop.f32.mrf.mxu0
      %v1071 = vadd.f32 %v868, %v1070
      %1072 = vmatmul.bf16.gmra.mxu0 %v910
      %v1073 = vpop.f32.mrf.mxu0
      %v1074 = vadd.f32 %v868, %v1073
      %v1075 = vpop.f32.mrf.mxu0
      %v1076 = vadd.f32 %v868, %v1075
      %1077 = vmatmul.bf16.gmra.mxu0 %v913
      %v1078 = vpop.f32.mrf.mxu0
      %v1079 = vadd.f32 %v868, %v1078
      %v1080 = vpop.f32.mrf.mxu0
      %v1081 = vadd.f32 %v868, %v1080
      %1082 = vmatmul.bf16.gmra.mxu0 %v916
      %v1083 = vpop.f32.mrf.mxu0
      %v1084 = vadd.f32 %v868, %v1083
      %v1085 = vpop.f32.mrf.mxu0
      %v1086 = vadd.f32 %v868, %v1085
      %1087 = vmatmul.bf16.gmra.mxu0 %v919
      %v1088 = vpop.f32.mrf.mxu0
      %v1089 = vadd.f32 %v868, %v1088
      %v1090 = vpop.f32.mrf.mxu0
      %v1091 = vadd.f32 %v868, %v1090
      %1092 = vmatmul.bf16.gmra.mxu0 %v922
      %v1093 = vpop.f32.mrf.mxu0
      %v1094 = vadd.f32 %v868, %v1093
      %v1095 = vpop.f32.mrf.mxu0
      %v1096 = vadd.f32 %v868, %v1095
      %1097 = vmatmul.bf16.gmra.mxu0 %v925
      %v1098 = vpop.f32.mrf.mxu0
      %v1099 = vadd.f32 %v868, %v1098
      %v1100 = vpop.f32.mrf.mxu0
      %v1101 = vadd.f32 %v868, %v1100
      %1102 = vmatmul.bf16.gmra.mxu0 %v928
      %v1103 = vpop.f32.mrf.mxu0
      %v1104 = vadd.f32 %v868, %v1103
      %v1105 = vpop.f32.mrf.mxu0
      %v1106 = vadd.f32 %v868, %v1105
      %1107 = vdwg.mxu0
      %1108 = vst [vmem:[%s228] sm:$0xff] %v940
      %1109 = vst [vmem:[%s228 + $0x8] sm:$0xff] %v1029
      %1110 = vst [vmem:[%s228 + $0x10] sm:$0xff] %v942
      %1111 = vst [vmem:[%s228 + $0x18] sm:$0xff] %v1031
      %1112 = vst [vmem:[%s228 + $0x20] sm:$0xff] %v945
      %1113 = vst [vmem:[%s228 + $0x28] sm:$0xff] %v1034
      %1114 = vst [vmem:[%s228 + $0x30] sm:$0xff] %v947
      %1115 = vst [vmem:[%s228 + $0x38] sm:$0xff] %v1036
      %1116 = vst [vmem:[%s228 + $0x40] sm:$0xff] %v950
      %1117 = vst [vmem:[%s228 + $0x48] sm:$0xff] %v1039
      %1118 = vst [vmem:[%s228 + $0x50] sm:$0xff] %v952
      %1119 = vst [vmem:[%s228 + $0x58] sm:$0xff] %v1041
      %1120 = vst [vmem:[%s228 + $0x60] sm:$0xff] %v955
      %1121 = vst [vmem:[%s228 + $0x68] sm:$0xff] %v1044
      %1122 = vst [vmem:[%s228 + $0x70] sm:$0xff] %v957
      %1123 = vst [vmem:[%s228 + $0x78] sm:$0xff] %v1046
      %1124 = vst [vmem:[%s228 + $0x80] sm:$0xff] %v960
      %1125 = vst [vmem:[%s228 + $0x88] sm:$0xff] %v1049
      %1126 = vst [vmem:[%s228 + $0x90] sm:$0xff] %v962
      %1127 = vst [vmem:[%s228 + $0x98] sm:$0xff] %v1051
      %1128 = vst [vmem:[%s228 + $0xa0] sm:$0xff] %v965
      %1129 = vst [vmem:[%s228 + $0xa8] sm:$0xff] %v1054
      %1130 = vst [vmem:[%s228 + $0xb0] sm:$0xff] %v967
      %1131 = vst [vmem:[%s228 + $0xb8] sm:$0xff] %v1056
      %1132 = vst [vmem:[%s228 + $0xc0] sm:$0xff] %v970
      %1133 = vst [vmem:[%s228 + $0xc8] sm:$0xff] %v1059
      %1134 = vst [vmem:[%s228 + $0xd0] sm:$0xff] %v972
      %1135 = vst [vmem:[%s228 + $0xd8] sm:$0xff] %v1061
      %1136 = vst [vmem:[%s228 + $0xe0] sm:$0xff] %v975
      %1137 = vst [vmem:[%s228 + $0xe8] sm:$0xff] %v1064
      %1138 = vst [vmem:[%s228 + $0xf0] sm:$0xff] %v977
      %1139 = vst [vmem:[%s228 + $0xf8] sm:$0xff] %v1066
      %1140 = vst [vmem:[%s228 + $0x100] sm:$0xff] %v980
      %1141 = vst [vmem:[%s228 + $0x108] sm:$0xff] %v1069
      %1142 = vst [vmem:[%s228 + $0x110] sm:$0xff] %v982
      %1143 = vst [vmem:[%s228 + $0x118] sm:$0xff] %v1071
      %1144 = vst [vmem:[%s228 + $0x120] sm:$0xff] %v985
      %1145 = vst [vmem:[%s228 + $0x128] sm:$0xff] %v1074
      %1146 = vst [vmem:[%s228 + $0x130] sm:$0xff] %v987
      %1147 = vst [vmem:[%s228 + $0x138] sm:$0xff] %v1076
      %1148 = vst [vmem:[%s228 + $0x140] sm:$0xff] %v990
      %1149 = vst [vmem:[%s228 + $0x148] sm:$0xff] %v1079
      %1150 = vst [vmem:[%s228 + $0x150] sm:$0xff] %v992
      %1151 = vst [vmem:[%s228 + $0x158] sm:$0xff] %v1081
      %1152 = vst [vmem:[%s228 + $0x160] sm:$0xff] %v995
      %1153 = vst [vmem:[%s228 + $0x168] sm:$0xff] %v1084
      %1154 = vst [vmem:[%s228 + $0x170] sm:$0xff] %v997
      %1155 = vst [vmem:[%s228 + $0x178] sm:$0xff] %v1086
      %1156 = vst [vmem:[%s228 + $0x180] sm:$0xff] %v1000
      %1157 = vst [vmem:[%s228 + $0x188] sm:$0xff] %v1089
      %1158 = vst [vmem:[%s228 + $0x190] sm:$0xff] %v1002
      %1159 = vst [vmem:[%s228 + $0x198] sm:$0xff] %v1091
      %1160 = vst [vmem:[%s228 + $0x1a0] sm:$0xff] %v1005
      %1161 = vst [vmem:[%s228 + $0x1a8] sm:$0xff] %v1094
      %1162 = vst [vmem:[%s228 + $0x1b0] sm:$0xff] %v1007
      %1163 = vst [vmem:[%s228 + $0x1b8] sm:$0xff] %v1096
      %1164 = vst [vmem:[%s228 + $0x1c0] sm:$0xff] %v1010
      %1165 = vst [vmem:[%s228 + $0x1c8] sm:$0xff] %v1099
      %1166 = vst [vmem:[%s228 + $0x1d0] sm:$0xff] %v1012
      %1167 = vst [vmem:[%s228 + $0x1d8] sm:$0xff] %v1101
      %1168 = vst [vmem:[%s228 + $0x1e0] sm:$0xff] %v1015
      %1169 = vst [vmem:[%s228 + $0x1e8] sm:$0xff] %v1104
      %1170 = vst [vmem:[%s228 + $0x1f0] sm:$0xff] %v1017
      %1171 = vst [vmem:[%s228 + $0x1f8] sm:$0xff] %v1106
      %s1172 = smul.u32 32, %s16
      %p1173 = scmp.lt.s32.totalorder %s1172, 63
      %s1174 = scalar_select %p1173, %s1172, 63
      %s1175 = smul.addr %s1174, 2
      %s1176 = smul.addr %s1175, 8
      %s1177 = scalar_lea.vmem %s5, %s1176
      // Predicated region
      $region41: #{yolo_head_scale.3} parent=39 // pred_check
        %p1178 = pneg %p144
      $region42: #{yolo_head_scale.3} parent=39 // pred_check_branch
        %1180 = sbr.rel (%p1178) target = $region44
      $region43: #{yolo_head_scale.3} parent=39 // pred_region
        %s1181 = smul.u32 32, %s16
      $region44: #{yolo_head_scale.3} parent=39 // pred_fallthru
        _
    $region40: #{yolo_head_scale.3} parent=5 // pred_fallthru
      _
    %p1182 = scmp.le.s32.totalorder 2, %s11
    // Predicated region
    $region45: #{yolo_head_scale.3} parent=5 // pred_check
      %p1183 = pneg %p1182
    $region46: #{yolo_head_scale.3} parent=5 // pred_check_branch
      %1185 = sbr.rel (%p1183) target = $region48
    $region47: #{yolo_head_scale.3} parent=5 // pred_region
      %s1186 = ssub.s32 %s11, 2
      // Predicated region
      $region49: #{yolo_head_scale.3} parent=47 // pred_check
        %p1187 = pneg %p150
      $region50: #{yolo_head_scale.3} parent=47 // pred_check_branch
        %1189 = sbr.rel (%p1187) target = $region52
      $region51: #{yolo_head_scale.3} parent=47 // pred_region
        %s1190 = smul.u32 32, %s17
        %p1191 = scmp.lt.s32.totalorder %s1190, 63
        %s1192 = scalar_select %p1191, %s1190, 63
        %s1193 = smul.addr %s1192, 2
        %s1194 = smul.addr %s1193, 8
        %s1195 = scalar_lea.vmem %s5, %s1194
      $region52: #{yolo_head_scale.3} parent=47 // pred_fallthru
        _
    $region48: #{yolo_head_scale.3} parent=5 // pred_fallthru
      _
  $region6: #{yolo_head_scale.3} parent=0 // loop_footer
    %s15 = sadd.s32 1, %s11
  $region7: #{yolo_head_scale.3} parent=0 // loop_footer_branch
    %10 = sbr.rel target = $region3
  $region8: #{yolo_head_scale.3} parent=0 // loop_exit
    _

// kernel: yolo_head_scale.2
$region0: #{yolo_head_scale.2}
  #allocation0 [shape = 'u32[]', space=smem, size = 0x4, offset = 0x4, fixed_abs, tag = 'smem constant byte address 0x4 - core index']
  #allocation1 [shape = 'u32[72,128]{1,0:T(1,128)}', space=vmem, size = 0x9000, scoped, tag = 'internal scratch']
  %s0 = inlined_call_operand.vmem [shape: bf16[2,18,18,8], index: 0, kind: input, shape index: {}]
  %s1 = inlined_call_operand.vmem [shape: bf16[72,16], index: 1, kind: input, shape index: {}]
  %s2 = inlined_call_operand.vmem [shape: f32[512,16], index: 2, kind: output, shape index: {0}]
  %s3 = inlined_call_operand.vmem [shape: f32[2,1,16], index: 3, kind: output, shape index: {1}]
  %s4 = inlined_call_operand.vmem [shape: f32[2,1,16], index: 4, kind: output, shape index: {2}]
  %5 = xla_tuple %s2, %s3, %s4
  %s6 = sld [smem:[#allocation0]]
  $region57: #{yolo_head_scale.2} parent=0
    _
  %s8 = ssub.s32 1, %s6
  %s9 = scalar_select 0, %s8, %s6
  loop: start=0, step=1, limit=4
  $region2: #{yolo_head_scale.2} parent=0 // loop_pre_header
    _
  $region3: #{yolo_head_scale.2} parent=0 // loop_header
    %s11 = sphi 0, %s15
    %p12 = scmp.ge.s32.totalorder %s11, 4
    %s21 = sphi 0, %s23
    %s24 = sphi 0, %s21
    %s25 = sphi 0, %s24
    %s41 = sphi 0, %s25
    %s45 = sphi 0, %s45
    %s47 = sphi 0, %s45
    %s48 = sphi 0, %s47
    %s62 = sphi 0, %s48
    %s68 = sphi 0, %s70
    %s71 = sphi 0, %s68
    %s72 = sphi 0, %s71
    %s88 = sphi 0, %s72
    %s94 = sphi 0, %s96
    %s97 = sphi 0, %s94
    %s98 = sphi 0, %s97
    %s114 = sphi 0, %s98
    %s120 = sphi 0, %s122
    %s123 = sphi 0, %s120
    %s124 = sphi 0, %s123
    %s140 = sphi 0, %s124
  $region4: #{yolo_head_scale.2} parent=0 // loop_header_branch
    %14 = sbr.rel (%p12) target = $region8
  $region5: #{yolo_head_scale.2} parent=0 // loop_body
    %s16 = ssub.s32 %s11, 1
    %s17 = ssub.s32 %s11, 2
    %s18 = sadd.s32 %s11, 1
    %s19 = ssub.s32 %s11, %s18
    %p20 = scmp.eq.s32.totalorder %s19, 0
    %s22 = sadd.s32 %s21, 1
    %s23 = scalar_select %p20, %s21, %s22
    %p26 = pneg %p20
    %p27 = scmp.eq.s32.totalorder %s11, 1
    %p28 = por %p26, %p27
    %p29 = scmp.ne.s32.totalorder %s21, %s24
    %p30 = scmp.eq.s32.totalorder %s11, 0
    %p31 = por %p29, %p30
    %p32 = scmp.ne.s32.totalorder %s21, %s24
    %p33 = scmp.eq.s32.totalorder %s16, 1
    %p34 = por %p32, %p33
    %p35 = scmp.ne.s32.totalorder %s24, %s25
    %p36 = scmp.eq.s32.totalorder %s16, 0
    %p37 = por %p35, %p36
    %p38 = scmp.ne.s32.totalorder %s24, %s25
    %p39 = scmp.eq.s32.totalorder %s17, 1
    %p40 = por %p38, %p39
    %p42 = scmp.ne.s32.totalorder %s25, %s41
    %p43 = scmp.eq.s32.totalorder %s17, 0
    %p44 = por %p42, %p43
    %s46 = sadd.s32 %s45, 1
    %p49 = scmp.eq.s32.totalorder %s11, 1
    %p50 = scmp.ne.s32.totalorder %s45, %s47
    %p51 = scmp.eq.s32.totalorder %s11, 0
    %p52 = por %p50, %p51
    %p53 = scmp.ne.s32.totalorder %s45, %s47
    %p54 = scmp.eq.s32.totalorder %s16, 1
    %p55 = por %p53, %p54
    %p56 = scmp.ne.s32.totalorder %s47, %s48
    %p57 = scmp.eq.s32.totalorder %s16, 0
    %p58 = por %p56, %p57
    %p59 = scmp.ne.s32.totalorder %s47, %s48
    %p60 = scmp.eq.s32.totalorder %s17, 1
    %p61 = por %p59, %p60
    %p63 = scmp.ne.s32.totalorder %s48, %s62
    %p64 = scmp.eq.s32.totalorder %s17, 0
    %p65 = por %p63, %p64
    %s66 = ssub.s32 %s11, %s18
    %p67 = scmp.eq.s32.totalorder %s66, 0
    %s69 = sadd.s32 %s68, 1
    %s70 = scalar_select %p67, %s68, %s69
    %p73 = pneg %p67
    %p74 = scmp.eq.s32.totalorder %s11, 1
    %p75 = por %p73, %p74
    %p76 = scmp.ne.s32.totalorder %s68, %s71
    %p77 = scmp.eq.s32.totalorder %s11, 0
    %p78 = por %p76, %p77
    %p79 = scmp.ne.s32.totalorder %s68, %s71
    %p80 = scmp.eq.s32.totalorder %s16, 1
    %p81 = por %p79, %p80
    %p82 = scmp.ne.s32.totalorder %s71, %s72
    %p83 = scmp.eq.s32.totalorder %s16, 0
    %p84 = por %p82, %p83
    %p85 = scmp.ne.s32.totalorder %s71, %s72
    %p86 = scmp.eq.s32.totalorder %s17, 1
    %p87 = por %p85, %p86
    %p89 = scmp.ne.s32.totalorder %s72, %s88
    %p90 = scmp.eq.s32.totalorder %s17, 0
    %p91 = por %p89, %p90
    %s92 = ssub.s32 %s11, %s18
    %p93 = scmp.eq.s32.totalorder %s92, 0
    %s95 = sadd.s32 %s94, 1
    %s96 = scalar_select %p93, %s94, %s95
    %p99 = pneg %p93
    %p100 = scmp.eq.s32.totalorder %s11, 1
    %p101 = por %p99, %p100
    %p102 = scmp.ne.s32.totalorder %s94, %s97
    %p103 = scmp.eq.s32.totalorder %s11, 0
    %p104 = por %p102, %p103
    %p105 = scmp.ne.s32.totalorder %s94, %s97
    %p106 = scmp.eq.s32.totalorder %s16, 1
    %p107 = por %p105, %p106
    %p108 = scmp.ne.s32.totalorder %s97, %s98
    %p109 = scmp.eq.s32.totalorder %s16, 0
    %p110 = por %p108, %p109
    %p111 = scmp.ne.s32.totalorder %s97, %s98
    %p112 = scmp.eq.s32.totalorder %s17, 1
    %p113 = por %p111, %p112
    %p115 = scmp.ne.s32.totalorder %s98, %s114
    %p116 = scmp.eq.s32.totalorder %s17, 0
    %p117 = por %p115, %p116
    %s118 = ssub.s32 %s11, %s18
    %p119 = scmp.eq.s32.totalorder %s118, 0
    %s121 = sadd.s32 %s120, 1
    %s122 = scalar_select %p119, %s120, %s121
    %p125 = pneg %p119
    %p126 = scmp.eq.s32.totalorder %s11, 1
    %p127 = por %p125, %p126
    %p128 = scmp.ne.s32.totalorder %s120, %s123
    %p129 = scmp.eq.s32.totalorder %s11, 0
    %p130 = por %p128, %p129
    %p131 = scmp.ne.s32.totalorder %s120, %s123
    %p132 = scmp.eq.s32.totalorder %s16, 1
    %p133 = por %p131, %p132
    %p134 = scmp.ne.s32.totalorder %s123, %s124
    %p135 = scmp.eq.s32.totalorder %s16, 0
    %p136 = por %p134, %p135
    %p137 = scmp.ne.s32.totalorder %s123, %s124
    %p138 = scmp.eq.s32.totalorder %s17, 1
    %p139 = por %p137, %p138
    %p141 = scmp.ne.s32.totalorder %s124, %s140
    %p142 = scmp.eq.s32.totalorder %s17, 0
    %p143 = por %p141, %p142
    %p144 = scmp.le.s32.totalorder 1, %s11
    %p145 = scmp.lt.s32.totalorder %s11, 3
    %p146 = pnand %p144, %p145
    %p147 = pneg %p146
    // Predicated region
    $region9: #{yolo_head_scale.2} parent=5 // pred_check
      _
    $region10: #{yolo_head_scale.2} parent=5 // pred_check_branch
      %149 = sbr.rel (%p146) target = $region12
    $region11: #{yolo_head_scale.2} parent=5 // pred_region
      %s150 = ssub.s32 %s11, 1
      // Predicated region
      $region13: #{yolo_head_scale.2} parent=11 // pred_check
        %p151 = pneg %p58
      $region14: #{yolo_head_scale.2} parent=11 // pred_check_branch
        %153 = sbr.rel (%p151) target = $region16
      $region15: #{yolo_head_scale.2} parent=11 // pred_region
        _
      $region16: #{yolo_head_scale.2} parent=11 // pred_fallthru
        _
    $region12: #{yolo_head_scale.2} parent=5 // pred_fallthru
      _
    %p154 = scmp.lt.s32.totalorder %s11, 2
    // Predicated region
    $region17: #{yolo_head_scale.2} parent=5 // pred_check
      %p155 = pneg %p154
    $region18: #{yolo_head_scale.2} parent=5 // pred_check_branch
      %157 = sbr.rel (%p155) target = $region20
    $region19: #{yolo_head_scale.2} parent=5 // pred_region
      // Predicated region
      $region21: #{yolo_head_scale.2} parent=19 // pred_check
        %p158 = pneg %p31
      $region22: #{yolo_head_scale.2} parent=19 // pred_check_branch
        %160 = sbr.rel (%p158) target = $region24
      $region23: #{yolo_head_scale.2} parent=19 // pred_region
        %p161 = scmp.lt.s32.totalorder %s11, 1
        %s162 = scalar_select %p161, %s11, 1
        %s163 = smul.addr %s162, 54
        %s164 = smul.addr %s163, 4
        %s165 = scalar_lea.vmem %s0, %s164
      $region24: #{yolo_head_scale.2} parent=19 // pred_fallthru
        _
    $region20: #{yolo_head_scale.2} parent=5 // pred_fallthru
      _
    %p166 = scmp.le.s32.totalorder 1, %s11
    %p167 = scmp.lt.s32.totalorder %s11, 3
    %p168 = pnand %p166, %p167
    %p169 = pneg %p168
    // Predicated region
    $region25: #{yolo_head_scale.2} parent=5 // pred_check
      _
    $region26: #{yolo_head_scale.2} parent=5 // pred_check_branch
      %171 = sbr.rel (%p168) target = $region28
    $region27: #{yolo_head_scale.2} parent=5 // pred_region
      %s172 = ssub.s32 %s11, 1
      %p173 = scmp.lt.s32.totalorder %s16, 1
      %s174 = scalar_select %p173, %s16, 1
      %s175 = smul.addr %s174, 54
      %s176 = smul.addr %s175, 4
      %s177 = scalar_lea.vmem %s0, %s176
      %p178 = pneg %p37
      %p179 = pneg %p34
      %p180 = pneg %p58
      %p181 = pneg %p55
      %p182 = pneg %p84
      %p183 = pneg %p81
      %s184 = smul.u32 32, %s16
      %p185 = scmp.lt.s32.totalorder %s184, 63
      %s186 = scalar_select %p185, %s184, 63
      %s187 = smul.addr %s186, 8
      %s188 = scalar_lea.vmem %s2, %s187
      %p189 = pneg %p110
      %p190 = pneg %p107
      %p191 = scmp.lt.s32.totalorder %s16, 1
      %s192 = scalar_select %p191, %s16, 1
      %s193 = scalar_lea.vmem %s3, %s192
      %p194 = pneg %p136
      %p195 = pneg %p133
      %p196 = scmp.lt.s32.totalorder %s16, 1
      %s197 = scalar_select %p196, %s16, 1
      %s198 = scalar_lea.vmem %s4, %s197
      %p199 = scmp.lt.s32.totalorder %s16, 1
      %s200 = scalar_select %p199, %s16, 1
      %s201 = smul.addr %s200, 54
      %s202 = smul.addr %s201, 4
      %s203 = scalar_lea.vmem %s0, %s202
      %s204 = smul.u32 32, %s16
      %p205 = scmp.lt.s32.totalorder %s204, 63
      %s206 = scalar_select %p205, %s204, 63
      %s207 = smul.addr %s206, 8
      %s208 = scalar_lea.vmem %s2, %s207
      %s209 = smul.u32 32, %s16
      %p210 = scmp.lt.s32.totalorder %s16, 1
      %s211 = scalar_select %p210, %s16, 1
      %s212 = scalar_lea.vmem %s3, %s211
      %p213 = scmp.lt.s32.totalorder %s16, 1
      %s214 = scalar_select %p213, %s16, 1
      %s215 = scalar_lea.vmem %s4, %s214
      %v217 = vld [vmem:[%s203] sm:$0xf]
      %v218 = vld [vmem:[%s203 + $0x4] sm:$0xf]
      %v219 = vld [vmem:[%s203 + $0x8] sm:$0x1]
      %v220 = vld [vmem:[%s203 + $0xc] sm:$0xf]
      %v221 = vld [vmem:[%s203 + $0x10] sm:$0xf]
      %v222 = vld [vmem:[%s203 + $0x14] sm:$0x1]
      %v223 = vld [vmem:[%s203 + $0x18] sm:$0xf]
      %v224 = vld [vmem:[%s203 + $0x1c] sm:$0xf]
      %v225 = vld [vmem:[%s203 + $0x20] sm:$0x1]
      %v226 = vld [vmem:[%s203 + $0x24] sm:$0xf]
      %v227 = vld [vmem:[%s203 + $0x28] sm:$0xf]
      %v228 = vld [vmem:[%s203 + $0x2c] sm:$0x1]
      %v229 = vld [vmem:[%s203 + $0x30] sm:$0xf]
      %v230 = vld [vmem:[%s203 + $0x34] sm:$0xf]
      %v231 = vld [vmem:[%s203 + $0x38] sm:$0x1]
      %v232 = vld [vmem:[%s203 + $0x3c] sm:$0xf]
      %v233 = vld [vmem:[%s203 + $0x40] sm:$0xf]
      %v234 = vld [vmem:[%s203 + $0x44] sm:$0x1]
      %v235 = vld [vmem:[%s203 + $0x48] sm:$0xf]
      %v236 = vld [vmem:[%s203 + $0x4c] sm:$0xf]
      %v237 = vld [vmem:[%s203 + $0x50] sm:$0x1]
      %v238 = vld [vmem:[%s203 + $0x54] sm:$0xf]
      %v239 = vld [vmem:[%s203 + $0x58] sm:$0xf]
      %v240 = vld [vmem:[%s203 + $0x5c] sm:$0x1]
      %v241 = vld [vmem:[%s203 + $0x60] sm:$0xf]
      %v242 = vld [vmem:[%s203 + $0x64] sm:$0xf]
      %v243 = vld [vmem:[%s203 + $0x68] sm:$0x1]
      %v244 = vld [vmem:[%s203 + $0x6c] sm:$0xf]
      %v245 = vld [vmem:[%s203 + $0x70] sm:$0xf]
      %v246 = vld [vmem:[%s203 + $0x74] sm:$0x1]
      %v247 = vld [vmem:[%s203 + $0x78] sm:$0xf]
      %v248 = vld [vmem:[%s203 + $0x7c] sm:$0xf]
      %v249 = vld [vmem:[%s203 + $0x80] sm:$0x1]
      %v250 = vld [vmem:[%s203 + $0x84] sm:$0xf]
      %v251 = vld [vmem:[%s203 + $0x88] sm:$0xf]
      %v252 = vld [vmem:[%s203 + $0x8c] sm:$0x1]
      %v253 = vld [vmem:[%s203 + $0x90] sm:$0xf]
      %v254 = vld [vmem:[%s203 + $0x94] sm:$0xf]
      %v255 = vld [vmem:[%s203 + $0x98] sm:$0x1]
      %v256 = vld [vmem:[%s203 + $0x9c] sm:$0xf]
      %v257 = vld [vmem:[%s203 + $0xa0] sm:$0xf]
      %v258 = vld [vmem:[%s203 + $0xa4] sm:$0x1]
      %v259 = vld [vmem:[%s203 + $0xa8] sm:$0xf]
      %v260 = vld [vmem:[%s203 + $0xac] sm:$0xf]
      %v261 = vld [vmem:[%s203 + $0xb0] sm:$0x1]
      %v262 = vld [vmem:[%s203 + $0xb4] sm:$0xf]
      %v263 = vld [vmem:[%s203 + $0xb8] sm:$0xf]
      %v264 = vld [vmem:[%s203 + $0xbc] sm:$0x1]
      %v265 = vld [vmem:[%s203 + $0xc0] sm:$0xf]
      %v266 = vld [vmem:[%s203 + $0xc4] sm:$0xf]
      %v267 = vld [vmem:[%s203 + $0xc8] sm:$0x1]
      %v268 = vld [vmem:[%s203 + $0xcc] sm:$0xf]
      %v269 = vld [vmem:[%s203 + $0xd0] sm:$0xf]
      %v270 = vld [vmem:[%s203 + $0xd4] sm:$0x1]
      %vm271 = vsmask.f32 3328
      %vm272 = vsmask.f32 7440
      %vm273 = vmor %vm271, %vm272
      %v275 = vshrl.u32 %v217, 16
      %v277 = vrot.slane %v275, 4
      %v278 = vshll.u32 %v217, 16
      %v280 = vrot.slane %v278, 5
      %v281 = vor.u32 %v277, %v280
      %v282 = vrot.slane %v281, 4
      %v284 = vshll.u32 %v218, 16
      %v286 = vrot.slane %v284, 5
      %v287 = vsel %vm273, %v282, %v286
      %v288 = vshrl.u32 %v218, 16
      %v290 = vrot.slane %v288, 4
      %v291 = vor.u32 %v290, %v286
      %v292 = vrot.slane %v291, 4
      %v294 = vshll.u32 %v219, 16
      %v296 = vrot.slane %v294, 5
      %v297 = vsel %vm273, %v292, %v296
      %v299 = vshrl.u32 %v220, 16
      %v301 = vrot.slane %v299, 4
      %v302 = vshll.u32 %v220, 16
      %v304 = vrot.slane %v302, 5
      %v305 = vor.u32 %v301, %v304
      %v306 = vrot.slane %v305, 4
      %v308 = vshll.u32 %v221, 16
      %v310 = vrot.slane %v308, 5
      %v311 = vsel %vm273, %v306, %v310
      %v312 = vshrl.u32 %v221, 16
      %v314 = vrot.slane %v312, 4
      %v315 = vor.u32 %v314, %v310
      %v316 = vrot.slane %v315, 4
      %v318 = vshll.u32 %v222, 16
      %v320 = vrot.slane %v318, 5
      %v321 = vsel %vm273, %v316, %v320
      %v323 = vshrl.u32 %v223, 16
      %v325 = vrot.slane %v323, 4
      %v326 = vshll.u32 %v223, 16
      %v328 = vrot.slane %v326, 5
      %v329 = vor.u32 %v325, %v328
      %v330 = vrot.slane %v329, 4
      %v332 = vshll.u32 %v224, 16
      %v334 = vrot.slane %v332, 5
      %v335 = vsel %vm273, %v330, %v334
      %v336 = vshrl.u32 %v224, 16
      %v338 = vrot.slane %v336, 4
      %v339 = vor.u32 %v338, %v334
      %v340 = vrot.slane %v339, 4
      %v342 = vshll.u32 %v225, 16
      %v344 = vrot.slane %v342, 5
      %v345 = vsel %vm273, %v340, %v344
      %v347 = vshrl.u32 %v226, 16
      %v349 = vrot.slane %v347, 4
      %v350 = vshll.u32 %v226, 16
      %v352 = vrot.slane %v350, 5
      %v353 = vor.u32 %v349, %v352
      %v354 = vrot.slane %v353, 4
      %v356 = vshll.u32 %v227, 16
      %v358 = vrot.slane %v356, 5
      %v359 = vsel %vm273, %v354, %v358
      %v360 = vshrl.u32 %v227, 16
      %v362 = vrot.slane %v360, 4
      %v363 = vor.u32 %v362, %v358
      %v364 = vrot.slane %v363, 4
      %v366 = vshll.u32 %v228, 16
      %v368 = vrot.slane %v366, 5
      %v369 = vsel %vm273, %v364, %v368
      %v371 = vshrl.u32 %v229, 16
      %v373 = vrot.slane %v371, 4
      %v374 = vshll.u32 %v229, 16
      %v376 = vrot.slane %v374, 5
      %v377 = vor.u32 %v373, %v376
      %v378 = vrot.slane %v377, 4
      %v380 = vshll.u32 %v230, 16
      %v382 = vrot.slane %v380, 5
      %v383 = vsel %vm273, %v378, %v382
      %v384 = vshrl.u32 %v230, 16
      %v386 = vrot.slane %v384, 4
      %v387 = vor.u32 %v386, %v382
      %v388 = vrot.slane %v387, 4
      %v390 = vshll.u32 %v231, 16
      %v392 = vrot.slane %v390, 5
      %v393 = vsel %vm273, %v388, %v392
      %v395 = vshrl.u32 %v232, 16
      %v397 = vrot.slane %v395, 4
      %v398 = vshll.u32 %v232, 16
      %v400 = vrot.slane %v398, 5
      %v401 = vor.u32 %v397, %v400
      %v402 = vrot.slane %v401, 4
      %v404 = vshll.u32 %v233, 16
      %v406 = vrot.slane %v404, 5
      %v407 = vsel %vm273, %v402, %v406
      %v408 = vshrl.u32 %v233, 16
      %v410 = vrot.slane %v408, 4
      %v411 = vor.u32 %v410, %v406
      %v412 = vrot.slane %v411, 4
      %v414 = vshll.u32 %v234, 16
      %v416 = vrot.slane %v414, 5
      %v417 = vsel %vm273, %v412, %v416
      %v419 = vshrl.u32 %v235, 16
      %v421 = vrot.slane %v419, 4
      %v422 = vshll.u32 %v235, 16
      %v424 = vrot.slane %v422, 5
      %v425 = vor.u32 %v421, %v424
      %v426 = vrot.slane %v425, 4
      %v428 = vshll.u32 %v236, 16
      %v430 = vrot.slane %v428, 5
      %v431 = vsel %vm273, %v426, %v430
      %v432 = vshrl.u32 %v236, 16
      %v434 = vrot.slane %v432, 4
      %v435 = vor.u32 %v434, %v430
      %v436 = vrot.slane %v435, 4
      %v438 = vshll.u32 %v237, 16
      %v440 = vrot.slane %v438, 5
      %v441 = vsel %vm273, %v436, %v440
      %v443 = vshrl.u32 %v238, 16
      %v445 = vrot.slane %v443, 4
      %v446 = vshll.u32 %v238, 16
      %v448 = vrot.slane %v446, 5
      %v449 = vor.u32 %v445, %v448
      %v450 = vrot.slane %v449, 4
      %v452 = vshll.u32 %v239, 16
      %v454 = vrot.slane %v452, 5
      %v455 = vsel %vm273, %v450, %v454
      %v456 = vshrl.u32 %v239, 16
      %v458 = vrot.slane %v456, 4
      %v459 = vor.u32 %v458, %v454
      %v460 = vrot.slane %v459, 4
      %v462 = vshll.u32 %v240, 16
      %v464 = vrot.slane %v462, 5
      %v465 = vsel %vm273, %v460, %v464
      %v467 = vshrl.u32 %v241, 16
      %v469 = vrot.slane %v467, 4
      %v470 = vshll.u32 %v241, 16
      %v472 = vrot.slane %v470, 5
      %v473 = vor.u32 %v469, %v472
      %v474 = vrot.slane %v473, 4
      %v476 = vshll.u32 %v242, 16
      %v478 = vrot.slane %v476, 5
      %v479 = vsel %vm273, %v474, %v478
      %v480 = vshrl.u32 %v242, 16
      %v482 = vrot.slane %v480, 4
      %v483 = vor.u32 %v482, %v478
      %v484 = vrot.slane %v483, 4
      %v486 = vshll.u32 %v243, 16
      %v488 = vrot.slane %v486, 5
      %v489 = vsel %vm273, %v484, %v488
      %v491 = vshrl.u32 %v244, 16
      %v493 = vrot.slane %v491, 4
      %v494 = vshll.u32 %v244, 16
      %v496 = vrot.slane %v494, 5
      %v497 = vor.u32 %v493, %v496
      %v498 = vrot.slane %v497, 4
      %v500 = vshll.u32 %v245, 16
      %v502 = vrot.slane %v500, 5
      %v503 = vsel %vm273, %v498, %v502
      %v504 = vshrl.u32 %v245, 16
      %v506 = vrot.slane %v504, 4
      %v507 = vor.u32 %v506, %v502
      %v508 = vrot.slane %v507, 4
      %v510 = vshll.u32 %v246, 16
      %v512 = vrot.slane %v510, 5
      %v513 = vsel %vm273, %v508, %v512
      %v515 = vshrl.u32 %v247, 16
      %v517 = vrot.slane %v515, 4
      %v518 = vshll.u32 %v247, 16
      %v520 = vrot.slane %v518, 5
      %v521 = vor.u32 %v517, %v520
      %v522 = vrot.slane %v521, 4
      %v524 = vshll.u32 %v248, 16
      %v526 = vrot.slane %v524, 5
      %v527 = vsel %vm273, %v522, %v526
      %v528 = vshrl.u32 %v248, 16
      %v530 = vrot.slane %v528, 4
      %v531 = vor.u32 %v530, %v526
      %v532 = vrot.slane %v531, 4
      %v534 = vshll.u32 %v249, 16
      %v536 = vrot.slane %v534, 5
      %v537 = vsel %vm273, %v532, %v536
      %v539 = vshrl.u32 %v250, 16
      %v541 = vrot.slane %v539, 4
      %v542 = vshll.u32 %v250, 16
      %v544 = vrot.slane %v542, 5
      %v545 = vor.u32 %v541, %v544
      %v546 = vrot.slane %v545, 4
      %v548 = vshll.u32 %v251, 16
      %v550 = vrot.slane %v548, 5
      %v551 = vsel %vm273, %v546, %v550
      %v552 = vshrl.u32 %v251, 16
      %v554 = vrot.slane %v552, 4
      %v555 = vor.u32 %v554, %v550
      %v556 = vrot.slane %v555, 4
      %v558 = vshll.u32 %v252, 16
      %v560 = vrot.slane %v558, 5
      %v561 = vsel %vm273, %v556, %v560
      %v563 = vshrl.u32 %v253, 16
      %v565 = vrot.slane %v563, 4
      %v566 = vshll.u32 %v253, 16
      %v568 = vrot.slane %v566, 5
      %v569 = vor.u32 %v565, %v568
      %v570 = vrot.slane %v569, 4
      %v572 = vshll.u32 %v254, 16
      %v574 = vrot.slane %v572, 5
      %v575 = vsel %vm273, %v570, %v574
      %v576 = vshrl.u32 %v254, 16
      %v578 = vrot.slane %v576, 4
      %v579 = vor.u32 %v578, %v574
      %v580 = vrot.slane %v579, 4
      %v582 = vshll.u32 %v255, 16
      %v584 = vrot.slane %v582, 5
      %v585 = vsel %vm273, %v580, %v584
      %v587 = vshrl.u32 %v256, 16
      %v589 = vrot.slane %v587, 4
      %v590 = vshll.u32 %v256, 16
      %v592 = vrot.slane %v590, 5
      %v593 = vor.u32 %v589, %v592
      %v594 = vrot.slane %v593, 4
      %v596 = vshll.u32 %v257, 16
      %v598 = vrot.slane %v596, 5
      %v599 = vsel %vm273, %v594, %v598
      %v600 = vshrl.u32 %v257, 16
      %v602 = vrot.slane %v600, 4
      %v603 = vor.u32 %v602, %v598
      %v604 = vrot.slane %v603, 4
      %v606 = vshll.u32 %v258, 16
      %v608 = vrot.slane %v606, 5
      %v609 = vsel %vm273, %v604, %v608
      %v611 = vshrl.u32 %v259, 16
      %v613 = vrot.slane %v611, 4
      %v614 = vshll.u32 %v259, 16
      %v616 = vrot.slane %v614, 5
      %v617 = vor.u32 %v613, %v616
      %v618 = vrot.slane %v617, 4
      %v620 = vshll.u32 %v260, 16
      %v622 = vrot.slane %v620, 5
      %v623 = vsel %vm273, %v618, %v622
      %v624 = vshrl.u32 %v260, 16
      %v626 = vrot.slane %v624, 4
      %v627 = vor.u32 %v626, %v622
      %v628 = vrot.slane %v627, 4
      %v630 = vshll.u32 %v261, 16
      %v632 = vrot.slane %v630, 5
      %v633 = vsel %vm273, %v628, %v632
      %v635 = vshrl.u32 %v262, 16
      %v637 = vrot.slane %v635, 4
      %v638 = vshll.u32 %v262, 16
      %v640 = vrot.slane %v638, 5
      %v641 = vor.u32 %v637, %v640
      %v642 = vrot.slane %v641, 4
      %v644 = vshll.u32 %v263, 16
      %v646 = vrot.slane %v644, 5
      %v647 = vsel %vm273, %v642, %v646
      %v648 = vshrl.u32 %v263, 16
      %v650 = vrot.slane %v648, 4
      %v651 = vor.u32 %v650, %v646
      %v652 = vrot.slane %v651, 4
      %v654 = vshll.u32 %v264, 16
      %v656 = vrot.slane %v654, 5
      %v657 = vsel %vm273, %v652, %v656
      %vm706 = vcmask 1042432
      %vm707 = vcmask 1046532
      %vm708 = vmor %vm706, %vm707
      %v709 = vrot.slane %v217, 5
      %v710 = vrot.slane %v709, 4
      %v711 = vrot.slane %v218, 5
      %v712 = vsel %vm708, %v710, %v711
      %v713 = vrot.slane %v711, 4
      %v714 = vrot.slane %v219, 5
      %v715 = vsel %vm708, %v713, %v714
      %v716 = vrot.slane %v220, 5
      %v717 = vrot.slane %v716, 4
      %v718 = vrot.slane %v221, 5
      %v719 = vsel %vm708, %v717, %v718
      %v720 = vrot.slane %v718, 4
      %v721 = vrot.slane %v222, 5
      %v722 = vsel %vm708, %v720, %v721
      %v723 = vrot.slane %v223, 5
      %v724 = vrot.slane %v723, 4
      %v725 = vrot.slane %v224, 5
      %v726 = vsel %vm708, %v724, %v725
      %v727 = vrot.slane %v725, 4
      %v728 = vrot.slane %v225, 5
      %v729 = vsel %vm708, %v727, %v728
      %v730 = vrot.slane %v226, 5
      %v731 = vrot.slane %v730, 4
      %v732 = vrot.slane %v227, 5
      %v733 = vsel %vm708, %v731, %v732
      %v734 = vrot.slane %v732, 4
      %v735 = vrot.slane %v228, 5
      %v736 = vsel %vm708, %v734, %v735
      %v737 = vrot.slane %v229, 5
      %v738 = vrot.slane %v737, 4
      %v739 = vrot.slane %v230, 5
      %v740 = vsel %vm708, %v738, %v739
      %v741 = vrot.slane %v739, 4
      %v742 = vrot.slane %v231, 5
      %v743 = vsel %vm708, %v741, %v742
      %v744 = vrot.slane %v232, 5
      %v745 = vrot.slane %v744, 4
      %v746 = vrot.slane %v233, 5
      %v747 = vsel %vm708, %v745, %v746
      %v748 = vrot.slane %v746, 4
      %v749 = vrot.slane %v234, 5
      %v750 = vsel %vm708, %v748, %v749
      %v751 = vrot.slane %v235, 5
      %v752 = vrot.slane %v751, 4
      %v753 = vrot.slane %v236, 5
      %v754 = vsel %vm708, %v752, %v753
      %v755 = vrot.slane %v753, 4
      %v756 = vrot.slane %v237, 5
      %v757 = vsel %vm708, %v755, %v756
      %v758 = vrot.slane %v238, 5
      %v759 = vrot.slane %v758, 4
      %v760 = vrot.slane %v239, 5
      %v761 = vsel %vm708, %v759, %v760
      %v762 = vrot.slane %v760, 4
      %v763 = vrot.slane %v240, 5
      %v764 = vsel %vm708, %v762, %v763
      %v765 = vrot.slane %v241, 5
      %v766 = vrot.slane %v765, 4
      %v767 = vrot.slane %v242, 5
      %v768 = vsel %vm708, %v766, %v767
      %v769 = vrot.slane %v767, 4
      %v770 = vrot.slane %v243, 5
      %v771 = vsel %vm708, %v769, %v770
      %v772 = vrot.slane %v244, 5
      %v773 = vrot.slane %v772, 4
      %v774 = vrot.slane %v245, 5
      %v775 = vsel %vm708, %v773, %v774
      %v776 = vrot.slane %v774, 4
      %v777 = vrot.slane %v246, 5
      %v778 = vsel %vm708, %v776, %v777
      %v779 = vrot.slane %v247, 5
      %v780 = vrot.slane %v779, 4
      %v781 = vrot.slane %v248, 5
      %v782 = vsel %vm708, %v780, %v781
      %v783 = vrot.slane %v781, 4
      %v784 = vrot.slane %v249, 5
      %v785 = vsel %vm708, %v783, %v784
      %v786 = vrot.slane %v250, 5
      %v787 = vrot.slane %v786, 4
      %v788 = vrot.slane %v251, 5
      %v789 = vsel %vm708, %v787, %v788
      %v790 = vrot.slane %v788, 4
      %v791 = vrot.slane %v252, 5
      %v792 = vsel %vm708, %v790, %v791
      %v793 = vrot.slane %v253, 5
      %v794 = vrot.slane %v793, 4
      %v795 = vrot.slane %v254, 5
      %v796 = vsel %vm708, %v794, %v795
      %v797 = vrot.slane %v795, 4
      %v798 = vrot.slane %v255, 5
      %v799 = vsel %vm708, %v797, %v798
      %v800 = vrot.slane %v256, 5
      %v801 = vrot.slane %v800, 4
      %v802 = vrot.slane %v257, 5
      %v803 = vsel %vm708, %v801, %v802
      %v804 = vrot.slane %v802, 4
      %v805 = vrot.slane %v258, 5
      %v806 = vsel %vm708, %v804, %v805
      %v807 = vrot.slane %v259, 5
      %v808 = vrot.slane %v807, 4
      %v809 = vrot.slane %v260, 5
      %v810 = vsel %vm708, %v808, %v809
      %v811 = vrot.slane %v809, 4
      %v812 = vrot.slane %v261, 5
      %v813 = vsel %vm708, %v811, %v812
      %v814 = vrot.slane %v262, 5
      %v815 = vrot.slane %v814, 4
      %v816 = vrot.slane %v263, 5
      %v817 = vsel %vm708, %v815, %v816
      %v818 = vrot.slane %v816, 4
      %v819 = vrot.slane %v264, 5
      %v820 = vsel %vm708, %v818, %v819
      %v822 = vshrl.u32 %v265, 16
      %v824 = vrot.slane %v822, 4
      %v825 = vshll.u32 %v265, 16
      %v827 = vrot.slane %v825, 5
      %v828 = vor.u32 %v824, %v827
      %v829 = vrot.slane %v828, 4
      %v831 = vshll.u32 %v266, 16
      %v833 = vrot.slane %v831, 5
      %v834 = vsel %vm273, %v829, %v833
      %v835 = vshrl.u32 %v266, 16
      %v837 = vrot.slane %v835, 4
      %v838 = vor.u32 %v837, %v833
      %v839 = vrot.slane %v838, 4
      %v841 = vshll.u32 %v267, 16
      %v843 = vrot.slane %v841, 5
      %v844 = vsel %vm273, %v839, %v843
      %v848 = vrot.slane %v265, 5
      %v849 = vrot.slane %v848, 4
      %v850 = vrot.slane %v266, 5
      %v851 = vsel %vm708, %v849, %v850
      %v852 = vrot.slane %v850, 4
      %v853 = vrot.slane %v267, 5
      %v854 = vsel %vm708, %v852, %v853
      %v856 = vshrl.u32 %v268, 16
      %v858 = vrot.slane %v856, 4
      %v859 = vshll.u32 %v268, 16
      %v861 = vrot.slane %v859, 5
      %v862 = vor.u32 %v858, %v861
      %v863 = vrot.slane %v862, 4
      %v865 = vshll.u32 %v269, 16
      %v867 = vrot.slane %v865, 5
      %v868 = vsel %vm273, %v863, %v867
      %v869 = vshrl.u32 %v269, 16
      %v871 = vrot.slane %v869, 4
      %v872 = vor.u32 %v871, %v867
      %v873 = vrot.slane %v872, 4
      %v875 = vshll.u32 %v270, 16
      %v877 = vrot.slane %v875, 5
      %v878 = vsel %vm273, %v873, %v877
      %v882 = vrot.slane %v268, 5
      %v883 = vrot.slane %v882, 4
      %v884 = vrot.slane %v269, 5
      %v885 = vsel %vm708, %v883, %v884
      %v886 = vrot.slane %v884, 4
      %v887 = vrot.slane %v270, 5
      %v888 = vsel %vm708, %v886, %v887
      %v889 = vunpack.c.l.b16 %v217
      %v890 = vunpack.c.l.b16 %v218
      %v891 = vunpack.c.l.b16 %v220
      %v892 = vunpack.c.l.b16 %v221
      %v893 = vunpack.c.l.b16 %v223
      %v894 = vunpack.c.l.b16 %v224
      %v895 = vunpack.c.l.b16 %v226
      %v896 = vunpack.c.l.b16 %v227
      %v897 = vunpack.c.l.b16 %v229
      %v898 = vunpack.c.l.b16 %v230
      %v899 = vunpack.c.l.b16 %v232
      %v900 = vunpack.c.l.b16 %v233
      %v901 = vunpack.c.l.b16 %v235
      %v902 = vunpack.c.l.b16 %v236
      %v903 = vunpack.c.l.b16 %v238
      %v904 = vunpack.c.l.b16 %v239
      %v905 = vunpack.c.l.b16 %v241
      %v906 = vunpack.c.l.b16 %v242
      %v907 = vunpack.c.l.b16 %v244
      %v908 = vunpack.c.l.b16 %v245
      %v909 = vunpack.c.l.b16 %v247
      %v910 = vunpack.c.l.b16 %v248
      %v911 = vunpack.c.l.b16 %v250
      %v912 = vunpack.c.l.b16 %v251
      %v913 = vunpack.c.l.b16 %v253
      %v914 = vunpack.c.l.b16 %v254
      %v915 = vunpack.c.l.b16 %v256
      %v916 = vunpack.c.l.b16 %v257
      %v917 = vunpack.c.l.b16 %v259
      %v918 = vunpack.c.l.b16 %v260
      %v919 = vunpack.c.l.b16 %v262
      %v920 = vunpack.c.l.b16 %v263
      %v921 = vpack.c.b16 %v890, %v889
      %v922 = vpack.c.b16 %v892, %v891
      %v923 = vpack.c.b16 %v894, %v893
      %v924 = vpack.c.b16 %v896, %v895
      %v925 = vpack.c.b16 %v898, %v897
      %v926 = vpack.c.b16 %v900, %v899
      %v927 = vpack.c.b16 %v902, %v901
      %v928 = vpack.c.b16 %v904, %v903
      %v929 = vpack.c.b16 %v906, %v905
      %v930 = vpack.c.b16 %v908, %v907
      %v931 = vpack.c.b16 %v910, %v909
      %v932 = vpack.c.b16 %v912, %v911
      %v933 = vpack.c.b16 %v914, %v913
      %v934 = vpack.c.b16 %v916, %v915
      %v935 = vpack.c.b16 %v918, %v917
      %v936 = vpack.c.b16 %v920, %v919
      %v937 = vunpack.c.l.b16 %v287
      %v938 = vunpack.c.l.b16 %v297
      %v939 = vunpack.c.l.b16 %v311
      %v940 = vunpack.c.l.b16 %v321
      %v941 = vunpack.c.l.b16 %v335
      %v942 = vunpack.c.l.b16 %v345
      %v943 = vunpack.c.l.b16 %v359
      %v944 = vunpack.c.l.b16 %v369
      %v945 = vunpack.c.l.b16 %v383
      %v946 = vunpack.c.l.b16 %v393
      %v947 = vunpack.c.l.b16 %v407
      %v948 = vunpack.c.l.b16 %v417
      %v949 = vunpack.c.l.b16 %v431
      %v950 = vunpack.c.l.b16 %v441
      %v951 = vunpack.c.l.b16 %v455
      %v952 = vunpack.c.l.b16 %v465
      %v953 = vunpack.c.l.b16 %v479
      %v954 = vunpack.c.l.b16 %v489
      %v955 = vunpack.c.l.b16 %v503
      %v956 = vunpack.c.l.b16 %v513
      %v957 = vunpack.c.l.b16 %v527
      %v958 = vunpack.c.l.b16 %v537
      %v959 = vunpack.c.l.b16 %v551
      %v960 = vunpack.c.l.b16 %v561
      %v961 = vunpack.c.l.b16 %v575
      %v962 = vunpack.c.l.b16 %v585
      %v963 = vunpack.c.l.b16 %v599
      %v964 = vunpack.c.l.b16 %v609
      %v965 = vunpack.c.l.b16 %v623
      %v966 = vunpack.c.l.b16 %v633
      %v967 = vunpack.c.l.b16 %v647
      %v968 = vunpack.c.l.b16 %v657
      %v969 = vpack.c.b16 %v938, %v937
      %v970 = vpack.c.b16 %v940, %v939
      %v971 = vpack.c.b16 %v942, %v941
      %v972 = vpack.c.b16 %v944, %v943
      %v973 = vpack.c.b16 %v946, %v945
      %v974 = vpack.c.b16 %v948, %v947
      %v975 = vpack.c.b16 %v950, %v949
      %v976 = vpack.c.b16 %v952, %v951
      %v977 = vpack.c.b16 %v954, %v953
      %v978 = vpack.c.b16 %v956, %v955
      %v979 = vpack.c.b16 %v958, %v957
      %v980 = vpack.c.b16 %v960, %v959
      %v981 = vpack.c.b16 %v962, %v961
      %v982 = vpack.c.b16 %v964, %v963
      %v983 = vpack.c.b16 %v966, %v965
      %v984 = vpack.c.b16 %v968, %v967
      %985 = vrot.lane.b32.xlu0 %v969, 8
      %v986 = vpop.permute.xlu0 %985
      %987 = vrot.lane.b32.xlu0 %v970, 8
      %v988 = vpop.permute.xlu0 %987
      %989 = vrot.lane.b32.xlu0 %v971, 8
      %v990 = vpop.permute.xlu0 %989
      %991 = vrot.lane.b32.xlu0 %v972, 8
      %v992 = vpop.permute.xlu0 %991
      %993 = vrot.lane.b32.xlu0 %v973, 8
      %v994 = vpop.permute.xlu0 %993
      %995 = vrot.lane.b32.xlu0 %v974, 8
      %v996 = vpop.permute.xlu0 %995
      %997 = vrot.lane.b32.xlu0 %v975, 8
      %v998 = vpop.permute.xlu0 %997
      %999 = vrot.lane.b32.xlu0 %v976, 8
      %v1000 = vpop.permute.xlu0 %999
      %1001 = vrot.lane.b32.xlu0 %v977, 8
      %v1002 = vpop.permute.xlu0 %1001
      %1003 = vrot.lane.b32.xlu0 %v978, 8
      %v1004 = vpop.permute.xlu0 %1003
      %1005 = vrot.lane.b32.xlu0 %v979, 8
      %v1006 = vpop.permute.xlu0 %1005
      %1007 = vrot.lane.b32.xlu0 %v980, 8
      %v1008 = vpop.permute.xlu0 %1007
      %1009 = vrot.lane.b32.xlu0 %v981, 8
      %v1010 = vpop.permute.xlu0 %1009
      %1011 = vrot.lane.b32.xlu0 %v982, 8
      %v1012 = vpop.permute.xlu0 %1011
      %1013 = vrot.lane.b32.xlu0 %v983, 8
      %v1014 = vpop.permute.xlu0 %1013
      %1015 = vrot.lane.b32.xlu0 %v984, 8
      %v1016 = vpop.permute.xlu0 %1015
      %v1017 = vunpack.c.l.b16 %v712
      %v1018 = vunpack.c.l.b16 %v715
      %v1019 = vunpack.c.l.b16 %v719
      %v1020 = vunpack.c.l.b16 %v722
      %v1021 = vunpack.c.l.b16 %v726
      %v1022 = vunpack.c.l.b16 %v729
      %v1023 = vunpack.c.l.b16 %v733
      %v1024 = vunpack.c.l.b16 %v736
      %v1025 = vunpack.c.l.b16 %v740
      %v1026 = vunpack.c.l.b16 %v743
      %v1027 = vunpack.c.l.b16 %v747
      %v1028 = vunpack.c.l.b16 %v750
      %v1029 = vunpack.c.l.b16 %v754
      %v1030 = vunpack.c.l.b16 %v757
      %v1031 = vunpack.c.l.b16 %v761
      %v1032 = vunpack.c.l.b16 %v764
      %v1033 = vunpack.c.l.b16 %v768
      %v1034 = vunpack.c.l.b16 %v771
      %v1035 = vunpack.c.l.b16 %v775
      %v1036 = vunpack.c.l.b16 %v778
      %v1037 = vunpack.c.l.b16 %v782
      %v1038 = vunpack.c.l.b16 %v785
      %v1039 = vunpack.c.l.b16 %v789
      %v1040 = vunpack.c.l.b16 %v792
      %v1041 = vunpack.c.l.b16 %v796
      %v1042 = vunpack.c.l.b16 %v799
      %v1043 = vunpack.c.l.b16 %v803
      %v1044 = vunpack.c.l.b16 %v806
      %v1045 = vunpack.c.l.b16 %v810
      %v1046 = vunpack.c.l.b16 %v813
      %v1047 = vunpack.c.l.b16 %v817
      %v1048 = vunpack.c.l.b16 %v820
      %v1049 = vpack.c.b16 %v1018, %v1017
      %v1050 = vpack.c.b16 %v1020, %v1019
      %v1051 = vpack.c.b16 %v1022, %v1021
      %v1052 = vpack.c.b16 %v1024, %v1023
      %v1053 = vpack.c.b16 %v1026, %v1025
      %v1054 = vpack.c.b16 %v1028, %v1027
      %v1055 = vpack.c.b16 %v1030, %v1029
      %v1056 = vpack.c.b16 %v1032, %v1031
      %v1057 = vpack.c.b16 %v1034, %v1033
      %v1058 = vpack.c.b16 %v1036, %v1035
      %v1059 = vpack.c.b16 %v1038, %v1037
      %v1060 = vpack.c.b16 %v1040, %v1039
      %v1061 = vpack.c.b16 %v1042, %v1041
      %v1062 = vpack.c.b16 %v1044, %v1043
      %v1063 = vpack.c.b16 %v1046, %v1045
      %v1064 = vpack.c.b16 %v1048, %v1047
      %1065 = vrot.lane.b32.xlu0 %v1049, 16
      %v1066 = vpop.permute.xlu0 %1065
      %1067 = vrot.lane.b32.xlu0 %v1050, 16
      %v1068 = vpop.permute.xlu0 %1067
      %1069 = vrot.lane.b32.xlu0 %v1051, 16
      %v1070 = vpop.permute.xlu0 %1069
      %1071 = vrot.lane.b32.xlu0 %v1052, 16
      %v1072 = vpop.permute.xlu0 %1071
      %1073 = vrot.lane.b32.xlu0 %v1053, 16
      %v1074 = vpop.permute.xlu0 %1073
      %1075 = vrot.lane.b32.xlu0 %v1054, 16
      %v1076 = vpop.permute.xlu0 %1075
      %1077 = vrot.lane.b32.xlu0 %v1055, 16
      %v1078 = vpop.permute.xlu0 %1077
      %1079 = vrot.lane.b32.xlu0 %v1056, 16
      %v1080 = vpop.permute.xlu0 %1079
      %1081 = vrot.lane.b32.xlu0 %v1057, 16
      %v1082 = vpop.permute.xlu0 %1081
      %1083 = vrot.lane.b32.xlu0 %v1058, 16
      %v1084 = vpop.permute.xlu0 %1083
      %1085 = vrot.lane.b32.xlu0 %v1059, 16
      %v1086 = vpop.permute.xlu0 %1085
      %1087 = vrot.lane.b32.xlu0 %v1060, 16
      %v1088 = vpop.permute.xlu0 %1087
      %1089 = vrot.lane.b32.xlu0 %v1061, 16
      %v1090 = vpop.permute.xlu0 %1089
      %1091 = vrot.lane.b32.xlu0 %v1062, 16
      %v1092 = vpop.permute.xlu0 %1091
      %1093 = vrot.lane.b32.xlu0 %v1063, 16
      %v1094 = vpop.permute.xlu0 %1093
      %1095 = vrot.lane.b32.xlu0 %v1064, 16
      %v1096 = vpop.permute.xlu0 %1095
      %v1097 = vunpack.c.l.b16 %v265
      %v1098 = vunpack.c.l.b16 %v266
      %v1099 = vpack.c.b16 %v1098, %v1097
      %1100 = vrot.lane.b32.xlu0 %v922, 24
      %v1101 = vpop.permute.xlu0 %1100
      %1102 = vrot.lane.b32.xlu0 %v923, 24
      %v1103 = vpop.permute.xlu0 %1102
      %1104 = vrot.lane.b32.xlu0 %v924, 24
      %v1105 = vpop.permute.xlu0 %1104
      %1106 = vrot.lane.b32.xlu0 %v925, 24
      %v1107 = vpop.permute.xlu0 %1106
      %1108 = vrot.lane.b32.xlu0 %v926, 24
      %v1109 = vpop.permute.xlu0 %1108
      %1110 = vrot.lane.b32.xlu0 %v927, 24
      %v1111 = vpop.permute.xlu0 %1110
      %1112 = vrot.lane.b32.xlu0 %v928, 24
      %v1113 = vpop.permute.xlu0 %1112
      %1114 = vrot.lane.b32.xlu0 %v929, 24
      %v1115 = vpop.permute.xlu0 %1114
      %1116 = vrot.lane.b32.xlu0 %v930, 24
      %v1117 = vpop.permute.xlu0 %1116
      %1118 = vrot.lane.b32.xlu0 %v931, 24
      %v1119 = vpop.permute.xlu0 %1118
      %1120 = vrot.lane.b32.xlu0 %v932, 24
      %v1121 = vpop.permute.xlu0 %1120
      %1122 = vrot.lane.b32.xlu0 %v933, 24
      %v1123 = vpop.permute.xlu0 %1122
      %1124 = vrot.lane.b32.xlu0 %v934, 24
      %v1125 = vpop.permute.xlu0 %1124
      %1126 = vrot.lane.b32.xlu0 %v935, 24
      %v1127 = vpop.permute.xlu0 %1126
      %1128 = vrot.lane.b32.xlu0 %v936, 24
      %v1129 = vpop.permute.xlu0 %1128
      %1130 = vrot.lane.b32.xlu0 %v1099, 24
      %v1131 = vpop.permute.xlu0 %1130
      %v1132 = vunpack.c.l.b16 %v834
      %v1133 = vunpack.c.l.b16 %v844
      %v1134 = vpack.c.b16 %v1133, %v1132
      %1135 = vrot.lane.b32.xlu0 %v970, 32
      %v1136 = vpop.permute.xlu0 %1135
      %1137 = vrot.lane.b32.xlu0 %v971, 32
      %v1138 = vpop.permute.xlu0 %1137
      %1139 = vrot.lane.b32.xlu0 %v972, 32
      %v1140 = vpop.permute.xlu0 %1139
      %1141 = vrot.lane.b32.xlu0 %v973, 32
      %v1142 = vpop.permute.xlu0 %1141
      %1143 = vrot.lane.b32.xlu0 %v974, 32
      %v1144 = vpop.permute.xlu0 %1143
      %1145 = vrot.lane.b32.xlu0 %v975, 32
      %v1146 = vpop.permute.xlu0 %1145
      %1147 = vrot.lane.b32.xlu0 %v976, 32
      %v1148 = vpop.permute.xlu0 %1147
      %1149 = vrot.lane.b32.xlu0 %v977, 32
      %v1150 = vpop.permute.xlu0 %1149
      %1151 = vrot.lane.b32.xlu0 %v978, 32
      %v1152 = vpop.permute.xlu0 %1151
      %1153 = vrot.lane.b32.xlu0 %v979, 32
      %v1154 = vpop.permute.xlu0 %1153
      %1155 = vrot.lane.b32.xlu0 %v980, 32
      %v1156 = vpop.permute.xlu0 %1155
      %1157 = vrot.lane.b32.xlu0 %v981, 32
      %v1158 = vpop.permute.xlu0 %1157
      %1159 = vrot.lane.b32.xlu0 %v982, 32
      %v1160 = vpop.permute.xlu0 %1159
      %1161 = vrot.lane.b32.xlu0 %v983, 32
      %v1162 = vpop.permute.xlu0 %1161
      %1163 = vrot.lane.b32.xlu0 %v984, 32
      %v1164 = vpop.permute.xlu0 %1163
      %1165 = vrot.lane.b32.xlu0 %v1134, 32
      %v1166 = vpop.permute.xlu0 %1165
      %v1167 = vunpack.c.l.b16 %v851
      %v1168 = vunpack.c.l.b16 %v854
      %v1169 = vpack.c.b16 %v1168, %v1167
      %1170 = vrot.lane.b32.xlu0 %v1050, 40
      %v1171 = vpop.permute.xlu0 %1170
      %1172 = vrot.lane.b32.xlu0 %v1051, 40
      %v1173 = vpop.permute.xlu0 %1172
      %1174 = vrot.lane.b32.xlu0 %v1052, 40
      %v1175 = vpop.permute.xlu0 %1174
      %1176 = vrot.lane.b32.xlu0 %v1053, 40
      %v1177 = vpop.permute.xlu0 %1176
      %1178 = vrot.lane.b32.xlu0 %v1054, 40
      %v1179 = vpop.permute.xlu0 %1178
      %1180 = vrot.lane.b32.xlu0 %v1055, 40
      %v1181 = vpop.permute.xlu0 %1180
      %1182 = vrot.lane.b32.xlu0 %v1056, 40
      %v1183 = vpop.permute.xlu0 %1182
      %1184 = vrot.lane.b32.xlu0 %v1057, 40
      %v1185 = vpop.permute.xlu0 %1184
      %1186 = vrot.lane.b32.xlu0 %v1058, 40
      %v1187 = vpop.permute.xlu0 %1186
      %1188 = vrot.lane.b32.xlu0 %v1059, 40
      %v1189 = vpop.permute.xlu0 %1188
      %1190 = vrot.lane.b32.xlu0 %v1060, 40
      %v1191 = vpop.permute.xlu0 %1190
      %1192 = vrot.lane.b32.xlu0 %v1061, 40
      %v1193 = vpop.permute.xlu0 %1192
      %1194 = vrot.lane.b32.xlu0 %v1062, 40
      %v1195 = vpop.permute.xlu0 %1194
      %1196 = vrot.lane.b32.xlu0 %v1063, 40
      %v1197 = vpop.permute.xlu0 %1196
      %1198 = vrot.lane.b32.xlu0 %v1064, 40
      %v1199 = vpop.permute.xlu0 %1198
      %1200 = vrot.lane.b32.xlu0 %v1169, 40
      %v1201 = vpop.permute.xlu0 %1200
      %v1202 = vunpack.c.l.b16 %v268
      %v1203 = vunpack.c.l.b16 %v269
      %v1204 = vpack.c.b16 %v1203, %v1202
      %1205 = vrot.lane.b32.xlu0 %v923, 48
      %v1206 = vpop.permute.xlu0 %1205
      %1207 = vrot.lane.b32.xlu0 %v924, 48
      %v1208 = vpop.permute.xlu0 %1207
      %1209 = vrot.lane.b32.xlu0 %v925, 48
      %v1210 = vpop.permute.xlu0 %1209
      %1211 = vrot.lane.b32.xlu0 %v926, 48
      %v1212 = vpop.permute.xlu0 %1211
      %1213 = vrot.lane.b32.xlu0 %v927, 48
      %v1214 = vpop.permute.xlu0 %1213
      %1215 = vrot.lane.b32.xlu0 %v928, 48
      %v1216 = vpop.permute.xlu0 %1215
      %1217 = vrot.lane.b32.xlu0 %v929, 48
      %v1218 = vpop.permute.xlu0 %1217
      %1219 = vrot.lane.b32.xlu0 %v930, 48
      %v1220 = vpop.permute.xlu0 %1219
      %1221 = vrot.lane.b32.xlu0 %v931, 48
      %v1222 = vpop.permute.xlu0 %1221
      %1223 = vrot.lane.b32.xlu0 %v932, 48
      %v1224 = vpop.permute.xlu0 %1223
      %1225 = vrot.lane.b32.xlu0 %v933, 48
      %v1226 = vpop.permute.xlu0 %1225
      %1227 = vrot.lane.b32.xlu0 %v934, 48
      %v1228 = vpop.permute.xlu0 %1227
      %1229 = vrot.lane.b32.xlu0 %v935, 48
      %v1230 = vpop.permute.xlu0 %1229
      %1231 = vrot.lane.b32.xlu0 %v936, 48
      %v1232 = vpop.permute.xlu0 %1231
      %1233 = vrot.lane.b32.xlu0 %v1099, 48
      %v1234 = vpop.permute.xlu0 %1233
      %1235 = vrot.lane.b32.xlu0 %v1204, 48
      %v1236 = vpop.permute.xlu0 %1235
      %v1237 = vunpack.c.l.b16 %v868
      %v1238 = vunpack.c.l.b16 %v878
      %v1239 = vpack.c.b16 %v1238, %v1237
      %1240 = vrot.lane.b32.xlu0 %v971, 56
      %v1241 = vpop.permute.xlu0 %1240
      %1242 = vrot.lane.b32.xlu0 %v972, 56
      %v1243 = vpop.permute.xlu0 %1242
      %1244 = vrot.lane.b32.xlu0 %v973, 56
      %v1245 = vpop.permute.xlu0 %1244
      %1246 = vrot.lane.b32.xlu0 %v974, 56
      %v1247 = vpop.permute.xlu0 %1246
      %1248 = vrot.lane.b32.xlu0 %v975, 56
      %v1249 = vpop.permute.xlu0 %1248
      %1250 = vrot.lane.b32.xlu0 %v976, 56
      %v1251 = vpop.permute.xlu0 %1250
      %1252 = vrot.lane.b32.xlu0 %v977, 56
      %v1253 = vpop.permute.xlu0 %1252
      %1254 = vrot.lane.b32.xlu0 %v978, 56
      %v1255 = vpop.permute.xlu0 %1254
      %1256 = vrot.lane.b32.xlu0 %v979, 56
      %v1257 = vpop.permute.xlu0 %1256
      %1258 = vrot.lane.b32.xlu0 %v980, 56
      %v1259 = vpop.permute.xlu0 %1258
      %1260 = vrot.lane.b32.xlu0 %v981, 56
      %v1261 = vpop.permute.xlu0 %1260
      %1262 = vrot.lane.b32.xlu0 %v982, 56
      %v1263 = vpop.permute.xlu0 %1262
      %1264 = vrot.lane.b32.xlu0 %v983, 56
      %v1265 = vpop.permute.xlu0 %1264
      %1266 = vrot.lane.b32.xlu0 %v984, 56
      %v1267 = vpop.permute.xlu0 %1266
      %1268 = vrot.lane.b32.xlu0 %v1134, 56
      %v1269 = vpop.permute.xlu0 %1268
      %1270 = vrot.lane.b32.xlu0 %v1239, 56
      %v1271 = vpop.permute.xlu0 %1270
      %v1272 = vunpack.c.l.b16 %v885
      %v1273 = vunpack.c.l.b16 %v888
      %v1274 = vpack.c.b16 %v1273, %v1272
      %1275 = vrot.lane.b32.xlu0 %v1051, 64
      %v1276 = vpop.permute.xlu0 %1275
      %1277 = vrot.lane.b32.xlu0 %v1052, 64
      %v1278 = vpop.permute.xlu0 %1277
      %1279 = vrot.lane.b32.xlu0 %v1053, 64
      %v1280 = vpop.permute.xlu0 %1279
      %1281 = vrot.lane.b32.xlu0 %v1054, 64
      %v1282 = vpop.permute.xlu0 %1281
      %1283 = vrot.lane.b32.xlu0 %v1055, 64
      %v1284 = vpop.permute.xlu0 %1283
      %1285 = vrot.lane.b32.xlu0 %v1056, 64
      %v1286 = vpop.permute.xlu0 %1285
      %1287 = vrot.lane.b32.xlu0 %v1057, 64
      %v1288 = vpop.permute.xlu0 %1287
      %1289 = vrot.lane.b32.xlu0 %v1058, 64
      %v1290 = vpop.permute.xlu0 %1289
      %1291 = vrot.lane.b32.xlu0 %v1059, 64
      %v1292 = vpop.permute.xlu0 %1291
      %1293 = vrot.lane.b32.xlu0 %v1060, 64
      %v1294 = vpop.permute.xlu0 %1293
      %1295 = vrot.lane.b32.xlu0 %v1061, 64
      %v1296 = vpop.permute.xlu0 %1295
      %1297 = vrot.lane.b32.xlu0 %v1062, 64
      %v1298 = vpop.permute.xlu0 %1297
      %1299 = vrot.lane.b32.xlu0 %v1063, 64
      %v1300 = vpop.permute.xlu0 %1299
      %1301 = vrot.lane.b32.xlu0 %v1064, 64
      %v1302 = vpop.permute.xlu0 %1301
      %1303 = vrot.lane.b32.xlu0 %v1169, 64
      %v1304 = vpop.permute.xlu0 %1303
      %1305 = vrot.lane.b32.xlu0 %v1274, 64
      %v1306 = vpop.permute.xlu0 %1305
      %vm1307 = vcmask 64512
      %v1310 = vsel %vm1307, %v921, %v986
      %v1313 = vsel %vm1307, %v922, %v988
      %v1316 = vsel %vm1307, %v923, %v990
      %v1319 = vsel %vm1307, %v924, %v992
      %v1322 = vsel %vm1307, %v925, %v994
      %v1325 = vsel %vm1307, %v926, %v996
      %v1328 = vsel %vm1307, %v927, %v998
      %v1331 = vsel %vm1307, %v928, %v1000
      %v1334 = vsel %vm1307, %v929, %v1002
      %v1337 = vsel %vm1307, %v930, %v1004
      %v1340 = vsel %vm1307, %v931, %v1006
      %v1343 = vsel %vm1307, %v932, %v1008
      %v1346 = vsel %vm1307, %v933, %v1010
      %v1349 = vsel %vm1307, %v934, %v1012
      %v1352 = vsel %vm1307, %v935, %v1014
      %v1355 = vsel %vm1307, %v936, %v1016
      %vm1356 = vcmask 130048
      %v1358 = vsel %vm1356, %v1310, %v1066
      %v1360 = vsel %vm1356, %v1313, %v1068
      %v1362 = vsel %vm1356, %v1316, %v1070
      %v1364 = vsel %vm1356, %v1319, %v1072
      %v1366 = vsel %vm1356, %v1322, %v1074
      %v1368 = vsel %vm1356, %v1325, %v1076
      %v1370 = vsel %vm1356, %v1328, %v1078
      %v1372 = vsel %vm1356, %v1331, %v1080
      %v1374 = vsel %vm1356, %v1334, %v1082
      %v1376 = vsel %vm1356, %v1337, %v1084
      %v1378 = vsel %vm1356, %v1340, %v1086
      %v1380 = vsel %vm1356, %v1343, %v1088
      %v1382 = vsel %vm1356, %v1346, %v1090
      %v1384 = vsel %vm1356, %v1349, %v1092
      %v1386 = vsel %vm1356, %v1352, %v1094
      %v1388 = vsel %vm1356, %v1355, %v1096
      %vm1389 = vcmask 195584
      %v1391 = vsel %vm1389, %v1358, %v1101
      %v1393 = vsel %vm1389, %v1360, %v1103
      %v1395 = vsel %vm1389, %v1362, %v1105
      %v1397 = vsel %vm1389, %v1364, %v1107
      %v1399 = vsel %vm1389, %v1366, %v1109
      %v1401 = vsel %vm1389, %v1368, %v1111
      %v1403 = vsel %vm1389, %v1370, %v1113
      %v1405 = vsel %vm1389, %v1372, %v1115
      %v1407 = vsel %vm1389, %v1374, %v1117
      %v1409 = vsel %vm1389, %v1376, %v1119
      %v1411 = vsel %vm1389, %v1378, %v1121
      %v1413 = vsel %vm1389, %v1380, %v1123
      %v1415 = vsel %vm1389, %v1382, %v1125
      %v1417 = vsel %vm1389, %v1384, %v1127
      %v1419 = vsel %vm1389, %v1386, %v1129
      %v1421 = vsel %vm1389, %v1388, %v1131
      %vm1422 = vcmask 261120
      %v1424 = vsel %vm1422, %v1391, %v1136
      %v1426 = vsel %vm1422, %v1393, %v1138
      %v1428 = vsel %vm1422, %v1395, %v1140
      %v1430 = vsel %vm1422, %v1397, %v1142
      %v1432 = vsel %vm1422, %v1399, %v1144
      %v1434 = vsel %vm1422, %v1401, %v1146
      %v1436 = vsel %vm1422, %v1403, %v1148
      %v1438 = vsel %vm1422, %v1405, %v1150
      %v1440 = vsel %vm1422, %v1407, %v1152
      %v1442 = vsel %vm1422, %v1409, %v1154
      %v1444 = vsel %vm1422, %v1411, %v1156
      %v1446 = vsel %vm1422, %v1413, %v1158
      %v1448 = vsel %vm1422, %v1415, %v1160
      %v1450 = vsel %vm1422, %v1417, %v1162
      %v1452 = vsel %vm1422, %v1419, %v1164
      %v1454 = vsel %vm1422, %v1421, %v1166
      %vm1455 = vcmask 326656
      %v1457 = vsel %vm1455, %v1424, %v1171
      %v1459 = vsel %vm1455, %v1426, %v1173
      %v1461 = vsel %vm1455, %v1428, %v1175
      %v1463 = vsel %vm1455, %v1430, %v1177
      %v1465 = vsel %vm1455, %v1432, %v1179
      %v1467 = vsel %vm1455, %v1434, %v1181
      %v1469 = vsel %vm1455, %v1436, %v1183
      %v1471 = vsel %vm1455, %v1438, %v1185
      %v1473 = vsel %vm1455, %v1440, %v1187
      %v1475 = vsel %vm1455, %v1442, %v1189
      %v1477 = vsel %vm1455, %v1444, %v1191
      %v1479 = vsel %vm1455, %v1446, %v1193
      %v1481 = vsel %vm1455, %v1448, %v1195
      %v1483 = vsel %vm1455, %v1450, %v1197
      %v1485 = vsel %vm1455, %v1452, %v1199
      %v1487 = vsel %vm1455, %v1454, %v1201
      %vm1488 = vcmask 392192
      %v1490 = vsel %vm1488, %v1457, %v1206
      %v1492 = vsel %vm1488, %v1459, %v1208
      %v1494 = vsel %vm1488, %v1461, %v1210
      %v1496 = vsel %vm1488, %v1463, %v1212
      %v1498 = vsel %vm1488, %v1465, %v1214
      %v1500 = vsel %vm1488, %v1467, %v1216
      %v1502 = vsel %vm1488, %v1469, %v1218
      %v1504 = vsel %vm1488, %v1471, %v1220
      %v1506 = vsel %vm1488, %v1473, %v1222
      %v1508 = vsel %vm1488, %v1475, %v1224
      %v1510 = vsel %vm1488, %v1477, %v1226
      %v1512 = vsel %vm1488, %v1479, %v1228
      %v1514 = vsel %vm1488, %v1481, %v1230
      %v1516 = vsel %vm1488, %v1483, %v1232
      %v1518 = vsel %vm1488, %v1485, %v1234
      %v1520 = vsel %vm1488, %v1487, %v1236
      %vm1521 = vcmask 457728
      %v1523 = vsel %vm1521, %v1490, %v1241
      %v1525 = vsel %vm1521, %v1492, %v1243
      %v1527 = vsel %vm1521, %v1494, %v1245
      %v1529 = vsel %vm1521, %v1496, %v1247
      %v1531 = vsel %vm1521, %v1498, %v1249
      %v1533 = vsel %vm1521, %v1500, %v1251
      %v1535 = vsel %vm1521, %v1502, %v1253
      %v1537 = vsel %vm1521, %v1504, %v1255
      %v1539 = vsel %vm1521, %v1506, %v1257
      %v1541 = vsel %vm1521, %v1508, %v1259
      %v1543 = vsel %vm1521, %v1510, %v1261
      %v1545 = vsel %vm1521, %v1512, %v1263
      %v1547 = vsel %vm1521, %v1514, %v1265
      %v1549 = vsel %vm1521, %v1516, %v1267
      %v1551 = vsel %vm1521, %v1518, %v1269
      %v1553 = vsel %vm1521, %v1520, %v1271
      %vm1554 = vcmask 523264
      %v1556 = vsel %vm1554, %v1523, %v1276
      %v1558 = vsel %vm1554, %v1525, %v1278
      %v1560 = vsel %vm1554, %v1527, %v1280
      %v1562 = vsel %vm1554, %v1529, %v1282
      %v1564 = vsel %vm1554, %v1531, %v1284
      %v1566 = vsel %vm1554, %v1533, %v1286
      %v1568 = vsel %vm1554, %v1535, %v1288
      %v1570 = vsel %vm1554, %v1537, %v1290
      %v1572 = vsel %vm1554, %v1539, %v1292
      %v1574 = vsel %vm1554, %v1541, %v1294
      %v1576 = vsel %vm1554, %v1543, %v1296
      %v1578 = vsel %vm1554, %v1545, %v1298
      %v1580 = vsel %vm1554, %v1547, %v1300
      %v1582 = vsel %vm1554, %v1549, %v1302
      %v1584 = vsel %vm1554, %v1551, %v1304
      %v1586 = vsel %vm1554, %v1553, %v1306
      %v1587 = vld [vmem:[%s1] sm:$0xf]
      %v1588 = vld [vmem:[%s1 + $0x4] sm:$0xf]
      %v1589 = vld [vmem:[%s1 + $0x8] sm:$0xf]
      %v1590 = vld [vmem:[%s1 + $0xc] sm:$0xf]
      %v1591 = vld [vmem:[%s1 + $0x10] sm:$0xf]
      %v1592 = vld [vmem:[%s1 + $0x14] sm:$0xf]
      %v1593 = vld [vmem:[%s1 + $0x18] sm:$0xf]
      %v1594 = vld [vmem:[%s1 + $0x1c] sm:$0xf]
      %v1595 = vld [vmem:[%s1 + $0x20] sm:$0xf]
      %v1605 = vunpack.c.l.b16 %v1587
      %v1606 = vunpack.c.l.b16 %v1588
      %v1607 = vunpack.c.l.b16 %v1589
      %v1608 = vunpack.c.l.b16 %v1590
      %v1609 = vunpack.c.l.b16 %v1591
      %v1610 = vunpack.c.l.b16 %v1592
      %v1611 = vunpack.c.l.b16 %v1593
      %v1612 = vunpack.c.l.b16 %v1594
      %v1613 = vunpack.c.l.b16 %v1595
      %v1614 = vpack.c.b16 %v1606, %v1605
      %v1615 = vpack.c.b16 %v1608, %v1607
      %v1616 = vpack.c.b16 %v1610, %v1609
      %v1617 = vpack.c.b16 %v1612, %v1611
      %v1618 = vpack.c.b16 %v1613, %v1613
      %vm1623 = vcmask 588800
      %v1624 = vsel %vm1623, %v1556, 0
      %v1626 = vsel %vm1623, %v1558, 0
      %v1628 = vsel %vm1623, %v1560, 0
      %v1630 = vsel %vm1623, %v1562, 0
      %v1632 = vsel %vm1623, %v1564, 0
      %v1634 = vsel %vm1623, %v1566, 0
      %v1636 = vsel %vm1623, %v1568, 0
      %v1638 = vsel %vm1623, %v1570, 0
      %v1640 = vsel %vm1623, %v1572, 0
      %v1642 = vsel %vm1623, %v1574, 0
      %v1644 = vsel %vm1623, %v1576, 0
      %v1646 = vsel %vm1623, %v1578, 0
      %v1648 = vsel %vm1623, %v1580, 0
      %v1650 = vsel %vm1623, %v1582, 0
      %v1652 = vsel %vm1623, %v1584, 0
      %v1654 = vsel %vm1623, %v1586, 0
      %vm1656 = vcmask 1043456
      %v1658 = vsel %vm1656, %v1618, 0
      %1660 = vmatpush.bf16.msra.mxu0 0
      %1661 = vmatpush.bf16.msra.mxu0 0
      %1662 = vmatpush.bf16.msra.mxu0 0
      %1663 = vmatpush.bf16.msra.mxu0 %v1658
      %1664 = vmatpush.bf16.msra.mxu0 %v1617
      %1665 = vmatpush.bf16.msra.mxu0 %v1616
      %1666 = vmatpush.bf16.msra.mxu0 %v1615
      %1667 = vmatpush.bf16.msra.mxu0 %v1614
      %1668 = vmatmul.bf16.gmra.mxu0 %v1624
      %v1669 = vpop.f32.mrf.mxu0
      %v1670 = vadd.f32 0.0, %v1669
      %v1671 = vpop.f32.mrf.mxu0
      %v1672 = vadd.f32 0.0, %v1671
      %1673 = vmatmul.bf16.gmra.mxu0 %v1626
      %v1674 = vpop.f32.mrf.mxu0
      %v1675 = vadd.f32 0.0, %v1674
      %v1676 = vpop.f32.mrf.mxu0
      %v1677 = vadd.f32 0.0, %v1676
      %1678 = vmatmul.bf16.gmra.mxu0 %v1628
      %v1679 = vpop.f32.mrf.mxu0
      %v1680 = vadd.f32 0.0, %v1679
      %v1681 = vpop.f32.mrf.mxu0
      %v1682 = vadd.f32 0.0, %v1681
      %1683 = vmatmul.bf16.gmra.mxu0 %v1630
      %v1684 = vpop.f32.mrf.mxu0
      %v1685 = vadd.f32 0.0, %v1684
      %v1686 = vpop.f32.mrf.mxu0
      %v1687 = vadd.f32 0.0, %v1686
      %1688 = vmatmul.bf16.gmra.mxu0 %v1632
      %v1689 = vpop.f32.mrf.mxu0
      %v1690 = vadd.f32 0.0, %v1689
      %v1691 = vpop.f32.mrf.mxu0
      %v1692 = vadd.f32 0.0, %v1691
      %1693 = vmatmul.bf16.gmra.mxu0 %v1634
      %v1694 = vpop.f32.mrf.mxu0
      %v1695 = vadd.f32 0.0, %v1694
      %v1696 = vpop.f32.mrf.mxu0
      %v1697 = vadd.f32 0.0, %v1696
      %1698 = vmatmul.bf16.gmra.mxu0 %v1636
      %v1699 = vpop.f32.mrf.mxu0
      %v1700 = vadd.f32 0.0, %v1699
      %v1701 = vpop.f32.mrf.mxu0
      %v1702 = vadd.f32 0.0, %v1701
      %1703 = vmatmul.bf16.gmra.mxu0 %v1638
      %v1704 = vpop.f32.mrf.mxu0
      %v1705 = vadd.f32 0.0, %v1704
      %v1706 = vpop.f32.mrf.mxu0
      %v1707 = vadd.f32 0.0, %v1706
      %1708 = vmatmul.bf16.gmra.mxu0 %v1640
      %v1709 = vpop.f32.mrf.mxu0
      %v1710 = vadd.f32 0.0, %v1709
      %v1711 = vpop.f32.mrf.mxu0
      %v1712 = vadd.f32 0.0, %v1711
      %1713 = vmatmul.bf16.gmra.mxu0 %v1642
      %v1714 = vpop.f32.mrf.mxu0
      %v1715 = vadd.f32 0.0, %v1714
      %v1716 = vpop.f32.mrf.mxu0
      %v1717 = vadd.f32 0.0, %v1716
      %1718 = vmatmul.bf16.gmra.mxu0 %v1644
      %v1719 = vpop.f32.mrf.mxu0
      %v1720 = vadd.f32 0.0, %v1719
      %v1721 = vpop.f32.mrf.mxu0
      %v1722 = vadd.f32 0.0, %v1721
      %1723 = vmatmul.bf16.gmra.mxu0 %v1646
      %v1724 = vpop.f32.mrf.mxu0
      %v1725 = vadd.f32 0.0, %v1724
      %v1726 = vpop.f32.mrf.mxu0
      %v1727 = vadd.f32 0.0, %v1726
      %1728 = vmatmul.bf16.gmra.mxu0 %v1648
      %v1729 = vpop.f32.mrf.mxu0
      %v1730 = vadd.f32 0.0, %v1729
      %v1731 = vpop.f32.mrf.mxu0
      %v1732 = vadd.f32 0.0, %v1731
      %1733 = vmatmul.bf16.gmra.mxu0 %v1650
      %v1734 = vpop.f32.mrf.mxu0
      %v1735 = vadd.f32 0.0, %v1734
      %v1736 = vpop.f32.mrf.mxu0
      %v1737 = vadd.f32 0.0, %v1736
      %1738 = vmatmul.bf16.gmra.mxu0 %v1652
      %v1739 = vpop.f32.mrf.mxu0
      %v1740 = vadd.f32 0.0, %v1739
      %v1741 = vpop.f32.mrf.mxu0
      %v1742 = vadd.f32 0.0, %v1741
      %1743 = vmatmul.bf16.gmra.mxu0 %v1654
      %v1744 = vpop.f32.mrf.mxu0
      %v1745 = vadd.f32 0.0, %v1744
      %v1746 = vpop.f32.mrf.mxu0
      %v1747 = vadd.f32 0.0, %v1746
      %1748 = vdwg.mxu0
      %1749 = vst.msk [vmem:[%s208] sm:$0xff] %vm1356, %v1670
      %1750 = vst.msk [vmem:[%s208 + $0x8] sm:$0xff] %vm1356, %v1672
      %1751 = vst.msk [vmem:[%s208 + $0x10] sm:$0xff] %vm1356, %v1675
      %1752 = vst.msk [vmem:[%s208 + $0x18] sm:$0xff] %vm1356, %v1677
      %1753 = vst.msk [vmem:[%s208 + $0x20] sm:$0xff] %vm1356, %v1680
      %1754 = vst.msk [vmem:[%s208 + $0x28] sm:$0xff] %vm1356, %v1682
      %1755 = vst.msk [vmem:[%s208 + $0x30] sm:$0xff] %vm1356, %v1685
      %1756 = vst.msk [vmem:[%s208 + $0x38] sm:$0xff] %vm1356, %v1687
      %1757 = vst.msk [vmem:[%s208 + $0x40] sm:$0xff] %vm1356, %v1690
      %1758 = vst.msk [vmem:[%s208 + $0x48] sm:$0xff] %vm1356, %v1692
      %1759 = vst.msk [vmem:[%s208 + $0x50] sm:$0xff] %vm1356, %v1695
      %1760 = vst.msk [vmem:[%s208 + $0x58] sm:$0xff] %vm1356, %v1697
      %1761 = vst.msk [vmem:[%s208 + $0x60] sm:$0xff] %vm1356, %v1700
      %1762 = vst.msk [vmem:[%s208 + $0x68] sm:$0xff] %vm1356, %v1702
      %1763 = vst.msk [vmem:[%s208 + $0x70] sm:$0xff] %vm1356, %v1705
      %1764 = vst.msk [vmem:[%s208 + $0x78] sm:$0xff] %vm1356, %v1707
      %1765 = vst.msk [vmem:[%s208 + $0x80] sm:$0xff] %vm1356, %v1710
      %1766 = vst.msk [vmem:[%s208 + $0x88] sm:$0xff] %vm1356, %v1712
      %1767 = vst.msk [vmem:[%s208 + $0x90] sm:$0xff] %vm1356, %v1715
      %1768 = vst.msk [vmem:[%s208 + $0x98] sm:$0xff] %vm1356, %v1717
      %1769 = vst.msk [vmem:[%s208 + $0xa0] sm:$0xff] %vm1356, %v1720
      %1770 = vst.msk [vmem:[%s208 + $0xa8] sm:$0xff] %vm1356, %v1722
      %1771 = vst.msk [vmem:[%s208 + $0xb0] sm:$0xff] %vm1356, %v1725
      %1772 = vst.msk [vmem:[%s208 + $0xb8] sm:$0xff] %vm1356, %v1727
      %1773 = vst.msk [vmem:[%s208 + $0xc0] sm:$0xff] %vm1356, %v1730
      %1774 = vst.msk [vmem:[%s208 + $0xc8] sm:$0xff] %vm1356, %v1732
      %1775 = vst.msk [vmem:[%s208 + $0xd0] sm:$0xff] %vm1356, %v1735
      %1776 = vst.msk [vmem:[%s208 + $0xd8] sm:$0xff] %vm1356, %v1737
      %1777 = vst.msk [vmem:[%s208 + $0xe0] sm:$0xff] %vm1356, %v1740
      %1778 = vst.msk [vmem:[%s208 + $0xe8] sm:$0xff] %vm1356, %v1742
      %1779 = vst.msk [vmem:[%s208 + $0xf0] sm:$0xff] %vm1356, %v1745
      %1780 = vst.msk [vmem:[%s208 + $0xf8] sm:$0xff] %vm1356, %v1747
      %v1781 = vsel %vm1356, %v1670, 0.0
      %v1782 = vsel %vm1356, %v1672, 0.0
      %v1783 = vadd.f32 %v1781, %v1782
      %v1784 = vsel %vm1356, %v1675, 0.0
      %v1785 = vadd.f32 %v1783, %v1784
      %v1786 = vsel %vm1356, %v1677, 0.0
      %v1787 = vadd.f32 %v1785, %v1786
      %v1788 = vsel %vm1356, %v1680, 0.0
      %v1789 = vadd.f32 %v1787, %v1788
      %v1790 = vsel %vm1356, %v1682, 0.0
      %v1791 = vadd.f32 %v1789, %v1790
      %v1792 = vsel %vm1356, %v1685, 0.0
      %v1793 = vadd.f32 %v1791, %v1792
      %v1794 = vsel %vm1356, %v1687, 0.0
      %v1795 = vadd.f32 %v1793, %v1794
      %v1796 = vsel %vm1356, %v1690, 0.0
      %v1797 = vadd.f32 %v1795, %v1796
      %v1798 = vsel %vm1356, %v1692, 0.0
      %v1799 = vadd.f32 %v1797, %v1798
      %v1800 = vsel %vm1356, %v1695, 0.0
      %v1801 = vadd.f32 %v1799, %v1800
      %v1802 = vsel %vm1356, %v1697, 0.0
      %v1803 = vadd.f32 %v1801, %v1802
      %v1804 = vsel %vm1356, %v1700, 0.0
      %v1805 = vadd.f32 %v1803, %v1804
      %v1806 = vsel %vm1356, %v1702, 0.0
      %v1807 = vadd.f32 %v1805, %v1806
      %v1808 = vsel %vm1356, %v1705, 0.0
      %v1809 = vadd.f32 %v1807, %v1808
      %v1810 = vsel %vm1356, %v1707, 0.0
      %v1811 = vadd.f32 %v1809, %v1810
      %v1812 = vsel %vm1356, %v1710, 0.0
      %v1813 = vadd.f32 %v1811, %v1812
      %v1814 = vsel %vm1356, %v1712, 0.0
      %v1815 = vadd.f32 %v1813, %v1814
      %v1816 = vsel %vm1356, %v1715, 0.0
      %v1817 = vadd.f32 %v1815, %v1816
      %v1818 = vsel %vm1356, %v1717, 0.0
      %v1819 = vadd.f32 %v1817, %v1818
      %v1820 = vsel %vm1356, %v1720, 0.0
      %v1821 = vadd.f32 %v1819, %v1820
      %v1822 = vsel %vm1356, %v1722, 0.0
      %v1823 = vadd.f32 %v1821, %v1822
      %v1824 = vsel %vm1356, %v1725, 0.0
      %v1825 = vadd.f32 %v1823, %v1824
      %v1826 = vsel %vm1356, %v1727, 0.0
      %v1827 = vadd.f32 %v1825, %v1826
      %v1828 = vsel %vm1356, %v1730, 0.0
      %v1829 = vadd.f32 %v1827, %v1828
      %v1830 = vsel %vm1356, %v1732, 0.0
      %v1831 = vadd.f32 %v1829, %v1830
      %v1832 = vsel %vm1356, %v1735, 0.0
      %v1833 = vadd.f32 %v1831, %v1832
      %v1834 = vsel %vm1356, %v1737, 0.0
      %v1835 = vadd.f32 %v1833, %v1834
      %v1836 = vsel %vm1356, %v1740, 0.0
      %v1837 = vadd.f32 %v1835, %v1836
      %v1838 = vsel %vm1356, %v1742, 0.0
      %v1839 = vadd.f32 %v1837, %v1838
      %v1840 = vsel %vm1356, %v1745, 0.0
      %v1841 = vadd.f32 %v1839, %v1840
      %v1842 = vsel %vm1356, %v1747, 0.0
      %v1843 = vadd.f32 %v1841, %v1842
      %v1844 = vrot.slane %v1843, 4
      %v1845 = vadd.f32 %v1843, %v1844
      %v1846 = vrot.slane %v1845, 2
      %v1847 = vadd.f32 %v1845, %v1846
      %v1848 = vrot.slane %v1847, 1
      %v1849 = vadd.f32 %v1847, %v1848
      %vm1850 = vcmask 122880
      %1851 = vst.msk [vmem:[%s212] sm:$0x1] %vm1850, %v1849
      %v1852 = vmul.f32 %v1670, %v1670
      %v1853 = vmul.f32 %v1672, %v1672
      %v1854 = vmul.f32 %v1675, %v1675
      %v1855 = vmul.f32 %v1677, %v1677
      %v1856 = vmul.f32 %v1680, %v1680
      %v1857 = vmul.f32 %v1682, %v1682
      %v1858 = vmul.f32 %v1685, %v1685
      %v1859 = vmul.f32 %v1687, %v1687
      %v1860 = vmul.f32 %v1690, %v1690
      %v1861 = vmul.f32 %v1692, %v1692
      %v1862 = vmul.f32 %v1695, %v1695
      %v1863 = vmul.f32 %v1697, %v1697
      %v1864 = vmul.f32 %v1700, %v1700
      %v1865 = vmul.f32 %v1702, %v1702
      %v1866 = vmul.f32 %v1705, %v1705
      %v1867 = vmul.f32 %v1707, %v1707
      %v1868 = vmul.f32 %v1710, %v1710
      %v1869 = vmul.f32 %v1712, %v1712
      %v1870 = vmul.f32 %v1715, %v1715
      %v1871 = vmul.f32 %v1717, %v1717
      %v1872 = vmul.f32 %v1720, %v1720
      %v1873 = vmul.f32 %v1722, %v1722
      %v1874 = vmul.f32 %v1725, %v1725
      %v1875 = vmul.f32 %v1727, %v1727
      %v1876 = vmul.f32 %v1730, %v1730
      %v1877 = vmul.f32 %v1732, %v1732
      %v1878 = vmul.f32 %v1735, %v1735
      %v1879 = vmul.f32 %v1737, %v1737
      %v1880 = vmul.f32 %v1740, %v1740
      %v1881 = vmul.f32 %v1742, %v1742
      %v1882 = vmul.f32 %v1745, %v1745
      %v1883 = vmul.f32 %v1747, %v1747
      %v1884 = vsel %vm1356, %v1852, 0.0
      %v1885 = vsel %vm1356, %v1853, 0.0
      %v1886 = vadd.f32 %v1884, %v1885
      %v1887 = vsel %vm1356, %v1854, 0.0
      %v1888 = vadd.f32 %v1886, %v1887
      %v1889 = vsel %vm1356, %v1855, 0.0
      %v1890 = vadd.f32 %v1888, %v1889
      %v1891 = vsel %vm1356, %v1856, 0.0
      %v1892 = vadd.f32 %v1890, %v1891
      %v1893 = vsel %vm1356, %v1857, 0.0
      %v1894 = vadd.f32 %v1892, %v1893
      %v1895 = vsel %vm1356, %v1858, 0.0
      %v1896 = vadd.f32 %v1894, %v1895
      %v1897 = vsel %vm1356, %v1859, 0.0
      %v1898 = vadd.f32 %v1896, %v1897
      %v1899 = vsel %vm1356, %v1860, 0.0
      %v1900 = vadd.f32 %v1898, %v1899
      %v1901 = vsel %vm1356, %v1861, 0.0
      %v1902 = vadd.f32 %v1900, %v1901
      %v1903 = vsel %vm1356, %v1862, 0.0
      %v1904 = vadd.f32 %v1902, %v1903
      %v1905 = vsel %vm1356, %v1863, 0.0
      %v1906 = vadd.f32 %v1904, %v1905
      %v1907 = vsel %vm1356, %v1864, 0.0
      %v1908 = vadd.f32 %v1906, %v1907
      %v1909 = vsel %vm1356, %v1865, 0.0
      %v1910 = vadd.f32 %v1908, %v1909
      %v1911 = vsel %vm1356, %v1866, 0.0
      %v1912 = vadd.f32 %v1910, %v1911
      %v1913 = vsel %vm1356, %v1867, 0.0
      %v1914 = vadd.f32 %v1912, %v1913
      %v1915 = vsel %vm1356, %v1868, 0.0
      %v1916 = vadd.f32 %v1914, %v1915
      %v1917 = vsel %vm1356, %v1869, 0.0
      %v1918 = vadd.f32 %v1916, %v1917
      %v1919 = vsel %vm1356, %v1870, 0.0
      %v1920 = vadd.f32 %v1918, %v1919
      %v1921 = vsel %vm1356, %v1871, 0.0
      %v1922 = vadd.f32 %v1920, %v1921
      %v1923 = vsel %vm1356, %v1872, 0.0
      %v1924 = vadd.f32 %v1922, %v1923
      %v1925 = vsel %vm1356, %v1873, 0.0
      %v1926 = vadd.f32 %v1924, %v1925
      %v1927 = vsel %vm1356, %v1874, 0.0
      %v1928 = vadd.f32 %v1926, %v1927
      %v1929 = vsel %vm1356, %v1875, 0.0
      %v1930 = vadd.f32 %v1928, %v1929
      %v1931 = vsel %vm1356, %v1876, 0.0
      %v1932 = vadd.f32 %v1930, %v1931
      %v1933 = vsel %vm1356, %v1877, 0.0
      %v1934 = vadd.f32 %v1932, %v1933
      %v1935 = vsel %vm1356, %v1878, 0.0
      %v1936 = vadd.f32 %v1934, %v1935
      %v1937 = vsel %vm1356, %v1879, 0.0
      %v1938 = vadd.f32 %v1936, %v1937
      %v1939 = vsel %vm1356, %v1880, 0.0
      %v1940 = vadd.f32 %v1938, %v1939
      %v1941 = vsel %vm1356, %v1881, 0.0
      %v1942 = vadd.f32 %v1940, %v1941
      %v1943 = vsel %vm1356, %v1882, 0.0
      %v1944 = vadd.f32 %v1942, %v1943
      %v1945 = vsel %vm1356, %v1883, 0.0
      %v1946 = vadd.f32 %v1944, %v1945
      %v1947 = vrot.slane %v1946, 4
      %v1948 = vadd.f32 %v1946, %v1947
      %v1949 = vrot.slane %v1948, 2
      %v1950 = vadd.f32 %v1948, %v1949
      %v1951 = vrot.slane %v1950, 1
      %v1952 = vadd.f32 %v1950, %v1951
      %1953 = vst.msk [vmem:[%s215] sm:$0x1] %vm1850, %v1952
      %s1954 = smul.u32 32, %s16
      %p1955 = scmp.lt.s32.totalorder %s1954, 63
      %s1956 = scalar_select %p1955, %s1954, 63
      %s1957 = smul.addr %s1956, 8
      %s1958 = scalar_lea.vmem %s2, %s1957
      %p1959 = scmp.lt.s32.totalorder %s16, 1
      %s1960 = scalar_select %p1959, %s16, 1
      %s1961 = scalar_lea.vmem %s3, %s1960
      %p1962 = scmp.lt.s32.totalorder %s16, 1
      %s1963 = scalar_select %p1962, %s16, 1
      %s1964 = scalar_lea.vmem %s4, %s1963
      // Predicated region
      $region29: #{yolo_head_scale.2} parent=27 // pred_check
        %p1965 = pneg %p81
      $region30: #{yolo_head_scale.2} parent=27 // pred_check_branch
        %1967 = sbr.rel (%p1965) target = $region32
      $region31: #{yolo_head_scale.2} parent=27 // pred_region
        %s1968 = smul.u32 32, %s16
      $region32: #{yolo_head_scale.2} parent=27 // pred_fallthru
        _
      // Predicated region
      $region33: #{yolo_head_scale.2} parent=27 // pred_check
        %p1969 = pneg %p107
      $region34: #{yolo_head_scale.2} parent=27 // pred_check_branch
        %1971 = sbr.rel (%p1969) target = $region36
      $region35: #{yolo_head_scale.2} parent=27 // pred_region
        _
      $region36: #{yolo_head_scale.2} parent=27 // pred_fallthru
        _
      // Predicated region
      $region37: #{yolo_head_scale.2} parent=27 // pred_check
        %p1972 = pneg %p133
      $region38: #{yolo_head_scale.2} parent=27 // pred_check_branch
        %1974 = sbr.rel (%p1972) target = $region40
      $region39: #{yolo_head_scale.2} parent=27 // pred_region
        _
      $region40: #{yolo_head_scale.2} parent=27 // pred_fallthru
        _
    $region28: #{yolo_head_scale.2} parent=5 // pred_fallthru
      _
    %p1975 = scmp.le.s32.totalorder 2, %s11
    // Predicated region
    $region41: #{yolo_head_scale.2} parent=5 // pred_check
      %p1976 = pneg %p1975
    $region42: #{yolo_head_scale.2} parent=5 // pred_check_branch
      %1978 = sbr.rel (%p1976) target = $region44
    $region43: #{yolo_head_scale.2} parent=5 // pred_region
      %s1979 = ssub.s32 %s11, 2
      // Predicated region
      $region45: #{yolo_head_scale.2} parent=43 // pred_check
        %p1980 = pneg %p87
      $region46: #{yolo_head_scale.2} parent=43 // pred_check_branch
        %1982 = sbr.rel (%p1980) target = $region48
      $region47: #{yolo_head_scale.2} parent=43 // pred_region
        %s1983 = smul.u32 32, %s17
        %p1984 = scmp.lt.s32.totalorder %s1983, 63
        %s1985 = scalar_select %p1984, %s1983, 63
        %s1986 = smul.addr %s1985, 8
        %s1987 = scalar_lea.vmem %s2, %s1986
      $region48: #{yolo_head_scale.2} parent=43 // pred_fallthru
        _
      // Predicated region
      $region49: #{yolo_head_scale.2} parent=43 // pred_check
        %p1988 = pneg %p113
      $region50: #{yolo_head_scale.2} parent=43 // pred_check_branch
        %1990 = sbr.rel (%p1988) target = $region52
      $region51: #{yolo_head_scale.2} parent=43 // pred_region
        %p1991 = scmp.lt.s32.totalorder %s17, 1
        %s1992 = scalar_select %p1991, %s17, 1
        %s1993 = scalar_lea.vmem %s3, %s1992
      $region52: #{yolo_head_scale.2} parent=43 // pred_fallthru
        _
      // Predicated region
      $region53: #{yolo_head_scale.2} parent=43 // pred_check
        %p1994 = pneg %p139
      $region54: #{yolo_head_scale.2} parent=43 // pred_check_branch
        %1996 = sbr.rel (%p1994) target = $region56
      $region55: #{yolo_head_scale.2} parent=43 // pred_region
        %p1997 = scmp.lt.s32.totalorder %s17, 1
        %s1998 = scalar_select %p1997, %s17, 1
        %s1999 = scalar_lea.vmem %s4, %s1998
      $region56: #{yolo_head_scale.2} parent=43 // pred_fallthru
        _
    $region44: #{yolo_head_scale.2} parent=5 // pred_fallthru
      _
  $region6: #{yolo_head_scale.2} parent=0 // loop_footer
    %s15 = sadd.s32 1, %s11
  $region7: #{yolo_head_scale.2} parent=0 // loop_footer_branch
    %10 = sbr.rel target = $region3
  $region8: #{yolo_head_scale.2} parent=0 // loop_exit
    _

</llo_original>
